<compile_context>
chip_gen: v7x
topology: tpu7x:2x2x1
jax: 0.10.0
libtpu: 0.0.40
codegen_flags: <defaults>
</compile_context>

<pallas_src>
import functools
import math

import numpy as np
import jax
import jax.numpy as jnp
from jax import lax
from jax.experimental import pallas as pl
from jax.experimental.pallas import tpu as pltpu


def _round_up(x, m):
    return -(-x // m) * m


# --------------------------------------------------------------------------- #
# Fused kernel: Gabor conv (MXU) + |.|^2 + Gaussian lowpass pooling + PCEN
# --------------------------------------------------------------------------- #
def _leaf_fused_kernel(x_ref, w_ref, g_ref, prm_ref, out_ref, xsh_ref, m_ref, *,
                       seq_len, kernel_size, stride, f_tile, e_len, pool_pad,
                       out_channels, floor):
    # x_ref  : (1, 1, t_pad) zero-padded signal (whole row, VMEM-resident across tiles)
    # w_ref  : (2C, K) stacked [real; imag] Gabor taps
    # g_ref  : (C, K)  per-channel Gaussian lowpass taps
    # prm_ref: (C, 8)  [bias, w_s, 1-w_s, alpha, 1/root, delta, delta^(1/root), 0]
    # out_ref: (1, C, f_tile)
    # xsh_ref: (K, e_len) VMEM scratch (im2col / shifted-signal matrix)
    # m_ref  : (C, 1)    VMEM scratch (EMA state carried across time tiles)
    T, K, C = seq_len, kernel_size, out_channels
    t = pl.program_id(1)
    step = f_tile * stride
    s0 = t * step                                  # signal offset of this tile's window
    if step % 128 == 0:
        s0 = pl.multiple_of(s0, 128)
    s_len = e_len + K - 1                          # window length incl. K-1 halo

    # ---- Stage 1: Gabor complex conv on the MXU ------------------------------
    x_win = x_ref[0, :, pl.ds(s0, s_len)]          # (1, s_len) single halo'd load
    for k0 in range(0, K, 8):                      # build shifted-x, 8 rows per dense store
        rows = [x_win[:, k:k + e_len] for k in range(k0, min(k0 + 8, K))]
        blk = rows[0] if len(rows) == 1 else jnp.concatenate(rows, axis=0)
        xsh_ref[pl.ds(k0, len(rows)), :] = blk
    acc = jnp.dot(w_ref[...], xsh_ref[...],
                  preferred_element_type=jnp.float32)          # (2C, e_len) on the MXU
    re, im = acc[:C, :], acc[C:, :]
    energy = re * re + im * im                                 # squared modulus, (C, e_len)

    # 'same' zero padding of the pooling realized by masking energy outside [0, T)
    pos = lax.broadcasted_iota(jnp.int32, (C, e_len), 1) + (t * step - pool_pad)
    energy = jnp.where((pos >= 0) & (pos < T), energy, 0.0)

    # ---- Stage 2: Gaussian lowpass pooling ('same', strided) + clamp ---------
    g = g_ref[...]                                 # (C, K)
    bias = prm_ref[:, 0:1]
    cols = []
    for j in range(f_tile):                        # bounded by f_tile (<= 128) per invocation
        win = energy[:, j * stride:j * stride + K]           # contiguous static window
        cols.append(jnp.sum(win * g, axis=-1, keepdims=True))
    pooled = jnp.concatenate(cols, axis=1) + bias            # lane-dense (C, f_tile)
    pooled = jnp.maximum(pooled, 1e-5)             # torch.maximum(outputs, 1e-5)

    # ---- Stage 3: EMA smoother as an associative scan over the frame lanes ---
    # m_j = w_s * p_j + (1 - w_s) * m_{j-1};  m_{-1} carried across tiles in m_ref.
    w_s = prm_ref[:, 1:2]
    a = prm_ref[:, 2:3]                            # 1 - w_s (precomputed)

    @pl.when(t == 0)
    def _():                                       # reference inits the EMA with p_0
        m_ref[...] = pooled[:, 0:1]

    m_prev = m_ref[...]
    A = jnp.broadcast_to(a, (C, f_tile))
    Bv = w_s * pooled
    d = 1
    while d < f_tile:                              # Hillis-Steele inclusive scan, log2(F) steps
        A_sh = jnp.concatenate(
            [jnp.ones((C, d), jnp.float32), A[:, :f_tile - d]], axis=1)
        B_sh = jnp.concatenate(
            [jnp.zeros((C, d), jnp.float32), Bv[:, :f_tile - d]], axis=1)
        Bv = A * B_sh + Bv
        A = A * A_sh
        d *= 2
    M = A * m_prev + Bv                            # (C, f_tile) smoother states
    m_ref[...] = M[:, f_tile - 1:f_tile]           # carry to the next time tile

    # ---- Stage 4: PCEN pointwise math (derived constants precomputed) --------
    alpha = prm_ref[:, 3:4]
    inv_root = prm_ref[:, 4:5]
    delta = prm_ref[:, 5:6]
    delta_root = prm_ref[:, 6:7]
    smooth_pow = jnp.exp(alpha * jnp.log(floor + M))           # (floor + M)^alpha
    out = jnp.exp(inv_root * jnp.log(pooled / smooth_pow + delta)) - delta_root
    out_ref[0, :, :] = out                         # single lane-dense store


# --------------------------------------------------------------------------- #
# Parameter initialization (deterministic, synthetic)
# --------------------------------------------------------------------------- #
def init_leaf_params(out_channels, sample_rate, window_len, min_freq=60.0, max_freq=None):
    C = out_channels
    K = int(sample_rate * window_len // 1000 + 1)
    if max_freq is None:
        max_freq = sample_rate / 2.0

    # GaborConv1d kernel parameters (mu, sigma).
    # TODO(synk): speechbrain initializes (mu, sigma) from a mel filterbank; here we use
    # deterministic linearly spaced values inside the same valid constraint range.
    freqs = jnp.linspace(min_freq, max_freq, C, dtype=jnp.float32)
    mu = 2.0 * jnp.pi * freqs / sample_rate
    sigma_lower = 4.0 * math.sqrt(2.0 * math.log(2.0)) / math.pi
    sigma_upper = K * math.sqrt(2.0 * math.log(2.0)) / math.pi
    sigma = jnp.linspace(0.5 * (sigma_lower + sigma_upper), sigma_lower, C, dtype=jnp.float32)
    mu = jnp.clip(mu, 0.0, math.pi)
    sigma = jnp.clip(sigma, sigma_lower, sigma_upper)
    t = jnp.arange(-(K // 2), (K + 1) // 2, dtype=jnp.float32)
    denom = (1.0 / (jnp.sqrt(2.0 * jnp.pi) * sigma))[:, None]
    gauss = jnp.exp(-(t[None, :] ** 2) / (2.0 * sigma[:, None] ** 2))
    wr = denom * jnp.cos(mu[:, None] * t[None, :]) * gauss
    wi = denom * jnp.sin(mu[:, None] * t[None, :]) * gauss

    # GaussianLowpassPooling: per-channel width, init constant 0.4, clamped.
    pool_sigma = jnp.clip(jnp.full((C,), 0.4, jnp.float32), 2.0 / K, 0.5)
    tt = jnp.arange(K, dtype=jnp.float32)
    numerator = tt[None, :] - 0.5 * (K - 1)
    denominator = pool_sigma[:, None] * 0.5 * (K - 1)
    g = jnp.exp(-0.5 * (numerator / denominator) ** 2)
    pool_bias = jnp.zeros((C, 1), jnp.float32)

    # PCEN params (speechbrain defaults used by Leaf)
    alpha = jnp.full((C, 1), 0.96, jnp.float32)
    delta = jnp.full((C, 1), 2.0, jnp.float32)
    root = jnp.full((C, 1), 2.0, jnp.float32)
    smooth = jnp.full((C, 1), 0.04, jnp.float32)
    return dict(wr=wr, wi=wi, g=g, pool_bias=pool_bias,
                alpha=alpha, delta=delta, root=root, smooth=smooth)


# --------------------------------------------------------------------------- #
# Wrapper: padding / weight stacking / param packing / grid setup
# --------------------------------------------------------------------------- #
def leaf_forward(x, params, *, sample_rate, window_len, window_stride):
    B, T = x.shape
    C, K = params["wr"].shape
    assert K % 2 == 1, "odd kernel_size assumed for symmetric 'same' padding"
    stride = int(sample_rate * window_stride // 1000)
    conv_pad = (K - 1) // 2
    pool_pad = K // 2
    n_frames = (T + 2 * pool_pad - K) // stride + 1

    # Time tiling: frames per tile (full frame dim for short clips, 128 for long audio).
    f_tile = n_frames if n_frames <= 128 else 128
    n_tiles = -(-n_frames // f_tile)
    n_frames_pad = n_tiles * f_tile
    e_len = _round_up((f_tile - 1) * stride + K, 128)   # energy columns per tile (lane aligned)
    s_len = e_len + K - 1                               # signal window per tile (with halo)

    # Pad the signal so every tile's halo'd window is in-bounds; masking inside the kernel
    # realizes the pooling's 'same' zero padding exactly.
    left = conv_pad + pool_pad
    t_need = (n_tiles - 1) * f_tile * stride + s_len
    t_pad = _round_up(max(t_need, left + T), 128)
    x_pad = jnp.pad(x.astype(jnp.float32), ((0, 0), (left, t_pad - left - T)))
    x_pad = x_pad[:, None, :]                                   # (B, 1, t_pad)

    w = jnp.concatenate([params["wr"], params["wi"]], axis=0)   # (2C, K) stacked taps

    # Packed per-channel params with derived PCEN constants precomputed once.
    w_s = jnp.clip(params["smooth"], 0.0, 1.0)
    alpha = jnp.minimum(params["alpha"], 1.0)
    inv_root = 1.0 / jnp.maximum(params["root"], 1.0)
    delta = params["delta"]
    prm = jnp.concatenate([params["pool_bias"], w_s, 1.0 - w_s, alpha, inv_root,
                           delta, delta ** inv_root, jnp.zeros_like(delta)], axis=1)  # (C, 8)

    feats = pl.pallas_call(
        functools.partial(_leaf_fused_kernel, seq_len=T, kernel_size=K, stride=stride,
                          f_tile=f_tile, e_len=e_len, pool_pad=pool_pad,
                          out_channels=C, floor=1e-12),
        out_shape=jax.ShapeDtypeStruct((B, C, n_frames_pad), jnp.float32),
        grid_spec=pltpu.PrefetchScalarGridSpec(
            num_scalar_prefetch=0,
            grid=(B, n_tiles),                       # batch rows independent, tiles sequential
            in_specs=[
                pl.BlockSpec((1, 1, t_pad), lambda b, t: (b, 0, 0)),   # signal, resident per row
                pl.BlockSpec((2 * C, K), lambda b, t: (0, 0)),         # Gabor taps
                pl.BlockSpec((C, K), lambda b, t: (0, 0)),             # pooling taps
                pl.BlockSpec((C, 8), lambda b, t: (0, 0)),             # packed params
            ],
            out_specs=pl.BlockSpec((1, C, f_tile), lambda b, t: (b, 0, t)),
            scratch_shapes=[
                pltpu.VMEM((K, e_len), jnp.float32),   # shifted-signal (im2col) matrix
                pltpu.VMEM((C, 1), jnp.float32),       # EMA carry across time tiles
            ],
        ),
        compiler_params=pltpu.CompilerParams(
            dimension_semantics=("parallel", "arbitrary")),
    )(x_pad, w, params["g"], prm)

    feats = feats[:, :, :n_frames]            # drop padded frames of the last tile
    # Leaf(skip_transpose=False) final transpose: (B, C, frames) -> (B, frames, C)
    return jnp.transpose(feats, (0, 2, 1))


# --------------------------------------------------------------------------- #
# Pure-JAX reference (for correctness check only)
# --------------------------------------------------------------------------- #
def leaf_reference(x, params, *, sample_rate, window_len, window_stride):
    B, T = x.shape
    wr, wi = params["wr"], params["wi"]
    C, K = wr.shape
    stride = int(sample_rate * window_stride // 1000)
    conv_pad = (K - 1) // 2
    xp = jnp.pad(x.astype(jnp.float32), ((0, 0), (conv_pad, conv_pad)))
    patches = jnp.stack([xp[:, t:t + K] for t in range(T)], axis=1)        # (B, T, K)
    real = jnp.einsum("btk,ck->bct", patches, wr, precision=lax.Precision.HIGHEST)
    imag = jnp.einsum("btk,ck->bct", patches, wi, precision=lax.Precision.HIGHEST)
    energy = real ** 2 + imag ** 2                                         # (B, C, T)

    pool_pad = K // 2
    ep = jnp.pad(energy, ((0, 0), (0, 0), (pool_pad, pool_pad)))
    n_frames = (T + 2 * pool_pad - K) // stride + 1
    g = params["g"]
    pooled = jnp.stack(
        [jnp.einsum("bck,ck->bc", ep[:, :, j * stride:j * stride + K], g,
                    precision=lax.Precision.HIGHEST) for j in range(n_frames)],
        axis=2) + params["pool_bias"][None, :, :]
    pooled = jnp.maximum(pooled, 1e-5)

    alpha = jnp.minimum(params["alpha"][:, 0], 1.0)
    one_over_root = 1.0 / jnp.maximum(params["root"][:, 0], 1.0)
    w = jnp.clip(params["smooth"][:, 0], 0.0, 1.0)
    delta = params["delta"][:, 0]
    m = pooled[:, :, 0]
    cols = []
    for t in range(n_frames):
        m = w[None, :] * pooled[:, :, t] + (1.0 - w[None, :]) * m
        col = ((pooled[:, :, t] / (1e-12 + m) ** alpha[None, :] + delta[None, :])
               ** one_over_root[None, :]) - delta[None, :] ** one_over_root[None, :]
        cols.append(col)
    out = jnp.stack(cols, axis=2)                                          # (B, C, F)
    return jnp.transpose(out, (0, 2, 1))


if __name__ == "__main__":
    # Small, consistent shapes: batch=2, 256 samples @ 1.6 kHz, out_channels=8,
    # 25 ms window (K=41 taps), 10 ms stride (16 samples) -> 16 frames.
    B, T, C = 2, 256, 8
    sample_rate, window_len, window_stride = 1600, 25.0, 10.0

    key = jax.random.PRNGKey(0)
    x = jax.random.uniform(key, (B, T), dtype=jnp.float32)   # like torch.rand input
    params = init_leaf_params(C, sample_rate, window_len)

    out = leaf_forward(x, params, sample_rate=sample_rate, window_len=window_len,
                       window_stride=window_stride)
    out = jax.block_until_ready(out)

    ref = leaf_reference(x, params, sample_rate=sample_rate, window_len=window_len,
                         window_stride=window_stride)
    # Tolerance absorbs MXU-matmul / scan accumulation-order differences vs HIGHEST einsums.
    np.testing.assert_allclose(np.asarray(out), np.asarray(ref), rtol=2e-3, atol=5e-4)
    assert out.shape == (2, 16, 8)
    print("KERNEL_OK")
</pallas_src>

<mosaic_0001>
module attributes {stable_mosaic.version = 11 : i64} {
  func.func @_leaf_fused_kernel(%arg0: i32, %arg1: i32, %arg2: memref<1x1x512xf32, #tpu.memory_space<vmem>>, %arg3: memref<16x41xf32, #tpu.memory_space<vmem>>, %arg4: memref<8x41xf32, #tpu.memory_space<vmem>>, %arg5: memref<8x8xf32, #tpu.memory_space<vmem>>, %arg6: memref<1x8x16xf32, #tpu.memory_space<vmem>>, %arg7: memref<41x384xf32, #tpu.memory_space<vmem>>, %arg8: memref<8x1xf32, #tpu.memory_space<vmem>>) attributes {dimension_semantics = [#tpu.dimension_semantics<parallel>, #tpu.dimension_semantics<arbitrary>], iteration_bounds = array<i64: 2, 1>, scalar_prefetch = 0 : i64, scratch_operands = 2 : i64, tpu.core_type = #tpu.core_type<tc>, window_params = [{transform_indices = @transform_0, window_bounds = array<i64: 1, 1, 512>}, {pipeline_mode = #tpu.pipeline_mode<synchronous>, transform_indices = @transform_1, window_bounds = array<i64: 16, 41>}, {pipeline_mode = #tpu.pipeline_mode<synchronous>, transform_indices = @transform_2, window_bounds = array<i64: 8, 41>}, {pipeline_mode = #tpu.pipeline_mode<synchronous>, transform_indices = @transform_3, window_bounds = array<i64: 8, 8>}, {transform_indices = @transform_4, window_bounds = array<i64: 1, 8, 16>}]} {
    %c256_i32 = arith.constant 256 : i32
    %0 = arith.muli %arg1, %c256_i32 : i32
    %1 = tpu.assume_multiple %0, 128 : i32
    %c0 = arith.constant 0 : index
    %c0_0 = arith.constant 0 : index
    %2 = arith.index_cast %1 : i32 to index
    %3 = vector.load %arg2[%c0, %c0_0, %2] : memref<1x1x512xf32, #tpu.memory_space<vmem>>, vector<1x1x424xf32>
    %4 = vector.shape_cast %3 : vector<1x1x424xf32> to vector<1x424xf32>
    %5 = vector.extract_strided_slice %4 {offsets = [0, 0], sizes = [1, 384], strides = [1, 1]} : vector<1x424xf32> to vector<1x384xf32>
    %6 = vector.extract_strided_slice %4 {offsets = [0, 1], sizes = [1, 384], strides = [1, 1]} : vector<1x424xf32> to vector<1x384xf32>
    %7 = vector.extract_strided_slice %4 {offsets = [0, 2], sizes = [1, 384], strides = [1, 1]} : vector<1x424xf32> to vector<1x384xf32>
    %8 = vector.extract_strided_slice %4 {offsets = [0, 3], sizes = [1, 384], strides = [1, 1]} : vector<1x424xf32> to vector<1x384xf32>
    %9 = vector.extract_strided_slice %4 {offsets = [0, 4], sizes = [1, 384], strides = [1, 1]} : vector<1x424xf32> to vector<1x384xf32>
    %10 = vector.extract_strided_slice %4 {offsets = [0, 5], sizes = [1, 384], strides = [1, 1]} : vector<1x424xf32> to vector<1x384xf32>
    %11 = vector.extract_strided_slice %4 {offsets = [0, 6], sizes = [1, 384], strides = [1, 1]} : vector<1x424xf32> to vector<1x384xf32>
    %12 = vector.extract_strided_slice %4 {offsets = [0, 7], sizes = [1, 384], strides = [1, 1]} : vector<1x424xf32> to vector<1x384xf32>
    %13 = tpu.concatenate %5, %6, %7, %8, %9, %10, %11, %12 in 0 : vector<1x384xf32>, vector<1x384xf32>, vector<1x384xf32>, vector<1x384xf32>, vector<1x384xf32>, vector<1x384xf32>, vector<1x384xf32>, vector<1x384xf32> -> vector<8x384xf32>
    %c0_1 = arith.constant 0 : index
    %c0_2 = arith.constant 0 : index
    %14 = vector.load %arg7[%c0_1, %c0_2] : memref<41x384xf32, #tpu.memory_space<vmem>>, vector<8x384xf32>
    tpu.vector_store %arg7[%c0_1, %c0_2], %13 {strides = array<i32>} : memref<41x384xf32, #tpu.memory_space<vmem>>, vector<8x384xf32>,
    %15 = vector.extract_strided_slice %4 {offsets = [0, 8], sizes = [1, 384], strides = [1, 1]} : vector<1x424xf32> to vector<1x384xf32>
    %16 = vector.extract_strided_slice %4 {offsets = [0, 9], sizes = [1, 384], strides = [1, 1]} : vector<1x424xf32> to vector<1x384xf32>
    %17 = vector.extract_strided_slice %4 {offsets = [0, 10], sizes = [1, 384], strides = [1, 1]} : vector<1x424xf32> to vector<1x384xf32>
    %18 = vector.extract_strided_slice %4 {offsets = [0, 11], sizes = [1, 384], strides = [1, 1]} : vector<1x424xf32> to vector<1x384xf32>
    %19 = vector.extract_strided_slice %4 {offsets = [0, 12], sizes = [1, 384], strides = [1, 1]} : vector<1x424xf32> to vector<1x384xf32>
    %20 = vector.extract_strided_slice %4 {offsets = [0, 13], sizes = [1, 384], strides = [1, 1]} : vector<1x424xf32> to vector<1x384xf32>
    %21 = vector.extract_strided_slice %4 {offsets = [0, 14], sizes = [1, 384], strides = [1, 1]} : vector<1x424xf32> to vector<1x384xf32>
    %22 = vector.extract_strided_slice %4 {offsets = [0, 15], sizes = [1, 384], strides = [1, 1]} : vector<1x424xf32> to vector<1x384xf32>
    %23 = tpu.concatenate %15, %16, %17, %18, %19, %20, %21, %22 in 0 : vector<1x384xf32>, vector<1x384xf32>, vector<1x384xf32>, vector<1x384xf32>, vector<1x384xf32>, vector<1x384xf32>, vector<1x384xf32>, vector<1x384xf32> -> vector<8x384xf32>
    %c8 = arith.constant 8 : index
    %c0_3 = arith.constant 0 : index
    %24 = vector.load %arg7[%c8, %c0_3] : memref<41x384xf32, #tpu.memory_space<vmem>>, vector<8x384xf32>
    tpu.vector_store %arg7[%c8, %c0_3], %23 {strides = array<i32>} : memref<41x384xf32, #tpu.memory_space<vmem>>, vector<8x384xf32>,
    %25 = vector.extract_strided_slice %4 {offsets = [0, 16], sizes = [1, 384], strides = [1, 1]} : vector<1x424xf32> to vector<1x384xf32>
    %26 = vector.extract_strided_slice %4 {offsets = [0, 17], sizes = [1, 384], strides = [1, 1]} : vector<1x424xf32> to vector<1x384xf32>
    %27 = vector.extract_strided_slice %4 {offsets = [0, 18], sizes = [1, 384], strides = [1, 1]} : vector<1x424xf32> to vector<1x384xf32>
    %28 = vector.extract_strided_slice %4 {offsets = [0, 19], sizes = [1, 384], strides = [1, 1]} : vector<1x424xf32> to vector<1x384xf32>
    %29 = vector.extract_strided_slice %4 {offsets = [0, 20], sizes = [1, 384], strides = [1, 1]} : vector<1x424xf32> to vector<1x384xf32>
    %30 = vector.extract_strided_slice %4 {offsets = [0, 21], sizes = [1, 384], strides = [1, 1]} : vector<1x424xf32> to vector<1x384xf32>
    %31 = vector.extract_strided_slice %4 {offsets = [0, 22], sizes = [1, 384], strides = [1, 1]} : vector<1x424xf32> to vector<1x384xf32>
    %32 = vector.extract_strided_slice %4 {offsets = [0, 23], sizes = [1, 384], strides = [1, 1]} : vector<1x424xf32> to vector<1x384xf32>
    %33 = tpu.concatenate %25, %26, %27, %28, %29, %30, %31, %32 in 0 : vector<1x384xf32>, vector<1x384xf32>, vector<1x384xf32>, vector<1x384xf32>, vector<1x384xf32>, vector<1x384xf32>, vector<1x384xf32>, vector<1x384xf32> -> vector<8x384xf32>
    %c16 = arith.constant 16 : index
    %c0_4 = arith.constant 0 : index
    %34 = vector.load %arg7[%c16, %c0_4] : memref<41x384xf32, #tpu.memory_space<vmem>>, vector<8x384xf32>
    tpu.vector_store %arg7[%c16, %c0_4], %33 {strides = array<i32>} : memref<41x384xf32, #tpu.memory_space<vmem>>, vector<8x384xf32>,
    %35 = vector.extract_strided_slice %4 {offsets = [0, 24], sizes = [1, 384], strides = [1, 1]} : vector<1x424xf32> to vector<1x384xf32>
    %36 = vector.extract_strided_slice %4 {offsets = [0, 25], sizes = [1, 384], strides = [1, 1]} : vector<1x424xf32> to vector<1x384xf32>
    %37 = vector.extract_strided_slice %4 {offsets = [0, 26], sizes = [1, 384], strides = [1, 1]} : vector<1x424xf32> to vector<1x384xf32>
    %38 = vector.extract_strided_slice %4 {offsets = [0, 27], sizes = [1, 384], strides = [1, 1]} : vector<1x424xf32> to vector<1x384xf32>
    %39 = vector.extract_strided_slice %4 {offsets = [0, 28], sizes = [1, 384], strides = [1, 1]} : vector<1x424xf32> to vector<1x384xf32>
    %40 = vector.extract_strided_slice %4 {offsets = [0, 29], sizes = [1, 384], strides = [1, 1]} : vector<1x424xf32> to vector<1x384xf32>
    %41 = vector.extract_strided_slice %4 {offsets = [0, 30], sizes = [1, 384], strides = [1, 1]} : vector<1x424xf32> to vector<1x384xf32>
    %42 = vector.extract_strided_slice %4 {offsets = [0, 31], sizes = [1, 384], strides = [1, 1]} : vector<1x424xf32> to vector<1x384xf32>
    %43 = tpu.concatenate %35, %36, %37, %38, %39, %40, %41, %42 in 0 : vector<1x384xf32>, vector<1x384xf32>, vector<1x384xf32>, vector<1x384xf32>, vector<1x384xf32>, vector<1x384xf32>, vector<1x384xf32>, vector<1x384xf32> -> vector<8x384xf32>
    %c24 = arith.constant 24 : index
    %c0_5 = arith.constant 0 : index
    %44 = vector.load %arg7[%c24, %c0_5] : memref<41x384xf32, #tpu.memory_space<vmem>>, vector<8x384xf32>
    tpu.vector_store %arg7[%c24, %c0_5], %43 {strides = array<i32>} : memref<41x384xf32, #tpu.memory_space<vmem>>, vector<8x384xf32>,
    %45 = vector.extract_strided_slice %4 {offsets = [0, 32], sizes = [1, 384], strides = [1, 1]} : vector<1x424xf32> to vector<1x384xf32>
    %46 = vector.extract_strided_slice %4 {offsets = [0, 33], sizes = [1, 384], strides = [1, 1]} : vector<1x424xf32> to vector<1x384xf32>
    %47 = vector.extract_strided_slice %4 {offsets = [0, 34], sizes = [1, 384], strides = [1, 1]} : vector<1x424xf32> to vector<1x384xf32>
    %48 = vector.extract_strided_slice %4 {offsets = [0, 35], sizes = [1, 384], strides = [1, 1]} : vector<1x424xf32> to vector<1x384xf32>
    %49 = vector.extract_strided_slice %4 {offsets = [0, 36], sizes = [1, 384], strides = [1, 1]} : vector<1x424xf32> to vector<1x384xf32>
    %50 = vector.extract_strided_slice %4 {offsets = [0, 37], sizes = [1, 384], strides = [1, 1]} : vector<1x424xf32> to vector<1x384xf32>
    %51 = vector.extract_strided_slice %4 {offsets = [0, 38], sizes = [1, 384], strides = [1, 1]} : vector<1x424xf32> to vector<1x384xf32>
    %52 = vector.extract_strided_slice %4 {offsets = [0, 39], sizes = [1, 384], strides = [1, 1]} : vector<1x424xf32> to vector<1x384xf32>
    %53 = tpu.concatenate %45, %46, %47, %48, %49, %50, %51, %52 in 0 : vector<1x384xf32>, vector<1x384xf32>, vector<1x384xf32>, vector<1x384xf32>, vector<1x384xf32>, vector<1x384xf32>, vector<1x384xf32>, vector<1x384xf32> -> vector<8x384xf32>
    %c32 = arith.constant 32 : index
    %c0_6 = arith.constant 0 : index
    %54 = vector.load %arg7[%c32, %c0_6] : memref<41x384xf32, #tpu.memory_space<vmem>>, vector<8x384xf32>
    tpu.vector_store %arg7[%c32, %c0_6], %53 {strides = array<i32>} : memref<41x384xf32, #tpu.memory_space<vmem>>, vector<8x384xf32>,
    %55 = vector.extract_strided_slice %4 {offsets = [0, 40], sizes = [1, 384], strides = [1, 1]} : vector<1x424xf32> to vector<1x384xf32>
    %c40 = arith.constant 40 : index
    %c0_7 = arith.constant 0 : index
    %56 = vector.load %arg7[%c40, %c0_7] : memref<41x384xf32, #tpu.memory_space<vmem>>, vector<1x384xf32>
    tpu.vector_store %arg7[%c40, %c0_7], %55 {strides = array<i32>} : memref<41x384xf32, #tpu.memory_space<vmem>>, vector<1x384xf32>,
    %c0_8 = arith.constant 0 : index
    %c0_9 = arith.constant 0 : index
    %57 = vector.load %arg3[%c0_8, %c0_9] : memref<16x41xf32, #tpu.memory_space<vmem>>, vector<16x41xf32>
    %c0_10 = arith.constant 0 : index
    %c0_11 = arith.constant 0 : index
    %58 = vector.load %arg7[%c0_10, %c0_11] : memref<41x384xf32, #tpu.memory_space<vmem>>, vector<41x384xf32>
    %cst = arith.constant dense<0.000000e+00> : vector<16x384xf32>
    %59 = tpu.matmul %57, %58, %cst {dimension_numbers = #tpu.dot_dimension_numbers<[1], [0], [0], [1], [0, 0, 1, 1], [], []>} : vector<16x41xf32>, vector<41x384xf32>, vector<16x384xf32> -> vector<16x384xf32>
    %60 = vector.extract_strided_slice %59 {offsets = [0, 0], sizes = [8, 384], strides = [1, 1]} : vector<16x384xf32> to vector<8x384xf32>
    %61 = vector.extract_strided_slice %59 {offsets = [8, 0], sizes = [8, 384], strides = [1, 1]} : vector<16x384xf32> to vector<8x384xf32>
    %62 = arith.mulf %60, %60 : vector<8x384xf32>
    %63 = arith.mulf %61, %61 : vector<8x384xf32>
    %64 = arith.addf %62, %63 : vector<8x384xf32>
    %65 = tpu.iota {dimensions = array<i32: 1>} : vector<8x384xi32>
    %c256_i32_12 = arith.constant 256 : i32
    %66 = arith.muli %arg1, %c256_i32_12 : i32
    %c20_i32 = arith.constant 20 : i32
    %67 = arith.subi %66, %c20_i32 : i32
    %68 = vector.broadcast %67 : i32 to vector<8x384xi32>
    %69 = arith.addi %65, %68 : vector<8x384xi32>
    %c0_i32 = arith.constant 0 : i32
    %70 = vector.broadcast %c0_i32 : i32 to vector<8x384xi32>
    %71 = arith.cmpi sge, %69, %70 : vector<8x384xi32>
    %c256_i32_13 = arith.constant 256 : i32
    %72 = vector.broadcast %c256_i32_13 : i32 to vector<8x384xi32>
    %73 = arith.cmpi slt, %69, %72 : vector<8x384xi32>
    %74 = arith.andi %71, %73 : vector<8x384xi1>
    %cst_14 = arith.constant 0.000000e+00 : f32
    %75 = vector.broadcast %cst_14 : f32 to vector<8x384xf32>
    %76 = arith.select %74, %64, %75 : vector<8x384xi1>, vector<8x384xf32>
    %c0_15 = arith.constant 0 : index
    %c0_16 = arith.constant 0 : index
    %77 = vector.load %arg4[%c0_15, %c0_16] : memref<8x41xf32, #tpu.memory_space<vmem>>, vector<8x41xf32>
    %c0_17 = arith.constant 0 : index
    %c0_18 = arith.constant 0 : index
    %78 = vector.load %arg5[%c0_17, %c0_18] : memref<8x8xf32, #tpu.memory_space<vmem>>, vector<8x1xf32>
    %79 = vector.extract_strided_slice %76 {offsets = [0, 0], sizes = [8, 41], strides = [1, 1]} : vector<8x384xf32> to vector<8x41xf32>
    %80 = arith.mulf %79, %77 : vector<8x41xf32>
    %cst_19 = arith.constant dense<0.000000e+00> : vector<8xf32>
    %81 = vector.multi_reduction <add>, %80, %cst_19 [1] : vector<8x41xf32> to vector<8xf32>
    %82 = vector.shape_cast %81 : vector<8xf32> to vector<8x1xf32>
    %83 = vector.extract_strided_slice %76 {offsets = [0, 16], sizes = [8, 41], strides = [1, 1]} : vector<8x384xf32> to vector<8x41xf32>
    %84 = arith.mulf %83, %77 : vector<8x41xf32>
    %cst_20 = arith.constant dense<0.000000e+00> : vector<8xf32>
    %85 = vector.multi_reduction <add>, %84, %cst_20 [1] : vector<8x41xf32> to vector<8xf32>
    %86 = vector.shape_cast %85 : vector<8xf32> to vector<8x1xf32>
    %87 = vector.extract_strided_slice %76 {offsets = [0, 32], sizes = [8, 41], strides = [1, 1]} : vector<8x384xf32> to vector<8x41xf32>
    %88 = arith.mulf %87, %77 : vector<8x41xf32>
    %cst_21 = arith.constant dense<0.000000e+00> : vector<8xf32>
    %89 = vector.multi_reduction <add>, %88, %cst_21 [1] : vector<8x41xf32> to vector<8xf32>
    %90 = vector.shape_cast %89 : vector<8xf32> to vector<8x1xf32>
    %91 = vector.extract_strided_slice %76 {offsets = [0, 48], sizes = [8, 41], strides = [1, 1]} : vector<8x384xf32> to vector<8x41xf32>
    %92 = arith.mulf %91, %77 : vector<8x41xf32>
    %cst_22 = arith.constant dense<0.000000e+00> : vector<8xf32>
    %93 = vector.multi_reduction <add>, %92, %cst_22 [1] : vector<8x41xf32> to vector<8xf32>
    %94 = vector.shape_cast %93 : vector<8xf32> to vector<8x1xf32>
    %95 = vector.extract_strided_slice %76 {offsets = [0, 64], sizes = [8, 41], strides = [1, 1]} : vector<8x384xf32> to vector<8x41xf32>
    %96 = arith.mulf %95, %77 : vector<8x41xf32>
    %cst_23 = arith.constant dense<0.000000e+00> : vector<8xf32>
    %97 = vector.multi_reduction <add>, %96, %cst_23 [1] : vector<8x41xf32> to vector<8xf32>
    %98 = vector.shape_cast %97 : vector<8xf32> to vector<8x1xf32>
    %99 = vector.extract_strided_slice %76 {offsets = [0, 80], sizes = [8, 41], strides = [1, 1]} : vector<8x384xf32> to vector<8x41xf32>
    %100 = arith.mulf %99, %77 : vector<8x41xf32>
    %cst_24 = arith.constant dense<0.000000e+00> : vector<8xf32>
    %101 = vector.multi_reduction <add>, %100, %cst_24 [1] : vector<8x41xf32> to vector<8xf32>
    %102 = vector.shape_cast %101 : vector<8xf32> to vector<8x1xf32>
    %103 = vector.extract_strided_slice %76 {offsets = [0, 96], sizes = [8, 41], strides = [1, 1]} : vector<8x384xf32> to vector<8x41xf32>
    %104 = arith.mulf %103, %77 : vector<8x41xf32>
    %cst_25 = arith.constant dense<0.000000e+00> : vector<8xf32>
    %105 = vector.multi_reduction <add>, %104, %cst_25 [1] : vector<8x41xf32> to vector<8xf32>
    %106 = vector.shape_cast %105 : vector<8xf32> to vector<8x1xf32>
    %107 = vector.extract_strided_slice %76 {offsets = [0, 112], sizes = [8, 41], strides = [1, 1]} : vector<8x384xf32> to vector<8x41xf32>
    %108 = arith.mulf %107, %77 : vector<8x41xf32>
    %cst_26 = arith.constant dense<0.000000e+00> : vector<8xf32>
    %109 = vector.multi_reduction <add>, %108, %cst_26 [1] : vector<8x41xf32> to vector<8xf32>
    %110 = vector.shape_cast %109 : vector<8xf32> to vector<8x1xf32>
    %111 = vector.extract_strided_slice %76 {offsets = [0, 128], sizes = [8, 41], strides = [1, 1]} : vector<8x384xf32> to vector<8x41xf32>
    %112 = arith.mulf %111, %77 : vector<8x41xf32>
    %cst_27 = arith.constant dense<0.000000e+00> : vector<8xf32>
    %113 = vector.multi_reduction <add>, %112, %cst_27 [1] : vector<8x41xf32> to vector<8xf32>
    %114 = vector.shape_cast %113 : vector<8xf32> to vector<8x1xf32>
    %115 = vector.extract_strided_slice %76 {offsets = [0, 144], sizes = [8, 41], strides = [1, 1]} : vector<8x384xf32> to vector<8x41xf32>
    %116 = arith.mulf %115, %77 : vector<8x41xf32>
    %cst_28 = arith.constant dense<0.000000e+00> : vector<8xf32>
    %117 = vector.multi_reduction <add>, %116, %cst_28 [1] : vector<8x41xf32> to vector<8xf32>
    %118 = vector.shape_cast %117 : vector<8xf32> to vector<8x1xf32>
    %119 = vector.extract_strided_slice %76 {offsets = [0, 160], sizes = [8, 41], strides = [1, 1]} : vector<8x384xf32> to vector<8x41xf32>
    %120 = arith.mulf %119, %77 : vector<8x41xf32>
    %cst_29 = arith.constant dense<0.000000e+00> : vector<8xf32>
    %121 = vector.multi_reduction <add>, %120, %cst_29 [1] : vector<8x41xf32> to vector<8xf32>
    %122 = vector.shape_cast %121 : vector<8xf32> to vector<8x1xf32>
    %123 = vector.extract_strided_slice %76 {offsets = [0, 176], sizes = [8, 41], strides = [1, 1]} : vector<8x384xf32> to vector<8x41xf32>
    %124 = arith.mulf %123, %77 : vector<8x41xf32>
    %cst_30 = arith.constant dense<0.000000e+00> : vector<8xf32>
    %125 = vector.multi_reduction <add>, %124, %cst_30 [1] : vector<8x41xf32> to vector<8xf32>
    %126 = vector.shape_cast %125 : vector<8xf32> to vector<8x1xf32>
    %127 = vector.extract_strided_slice %76 {offsets = [0, 192], sizes = [8, 41], strides = [1, 1]} : vector<8x384xf32> to vector<8x41xf32>
    %128 = arith.mulf %127, %77 : vector<8x41xf32>
    %cst_31 = arith.constant dense<0.000000e+00> : vector<8xf32>
    %129 = vector.multi_reduction <add>, %128, %cst_31 [1] : vector<8x41xf32> to vector<8xf32>
    %130 = vector.shape_cast %129 : vector<8xf32> to vector<8x1xf32>
    %131 = vector.extract_strided_slice %76 {offsets = [0, 208], sizes = [8, 41], strides = [1, 1]} : vector<8x384xf32> to vector<8x41xf32>
    %132 = arith.mulf %131, %77 : vector<8x41xf32>
    %cst_32 = arith.constant dense<0.000000e+00> : vector<8xf32>
    %133 = vector.multi_reduction <add>, %132, %cst_32 [1] : vector<8x41xf32> to vector<8xf32>
    %134 = vector.shape_cast %133 : vector<8xf32> to vector<8x1xf32>
    %135 = vector.extract_strided_slice %76 {offsets = [0, 224], sizes = [8, 41], strides = [1, 1]} : vector<8x384xf32> to vector<8x41xf32>
    %136 = arith.mulf %135, %77 : vector<8x41xf32>
    %cst_33 = arith.constant dense<0.000000e+00> : vector<8xf32>
    %137 = vector.multi_reduction <add>, %136, %cst_33 [1] : vector<8x41xf32> to vector<8xf32>
    %138 = vector.shape_cast %137 : vector<8xf32> to vector<8x1xf32>
    %139 = vector.extract_strided_slice %76 {offsets = [0, 240], sizes = [8, 41], strides = [1, 1]} : vector<8x384xf32> to vector<8x41xf32>
    %140 = arith.mulf %139, %77 : vector<8x41xf32>
    %cst_34 = arith.constant dense<0.000000e+00> : vector<8xf32>
    %141 = vector.multi_reduction <add>, %140, %cst_34 [1] : vector<8x41xf32> to vector<8xf32>
    %142 = vector.shape_cast %141 : vector<8xf32> to vector<8x1xf32>
    %143 = tpu.concatenate %82, %86, %90, %94, %98, %102, %106, %110, %114, %118, %122, %126, %130, %134, %138, %142 in 1 : vector<8x1xf32>, vector<8x1xf32>, vector<8x1xf32>, vector<8x1xf32>, vector<8x1xf32>, vector<8x1xf32>, vector<8x1xf32>, vector<8x1xf32>, vector<8x1xf32>, vector<8x1xf32>, vector<8x1xf32>, vector<8x1xf32>, vector<8x1xf32>, vector<8x1xf32>, vector<8x1xf32>, vector<8x1xf32> -> vector<8x16xf32>
    %144 = vector.broadcast %78 : vector<8x1xf32> to vector<8x16xf32>
    %145 = arith.addf %143, %144 : vector<8x16xf32>
    %cst_35 = arith.constant 9.99999974E-6 : f32
    %146 = vector.broadcast %cst_35 : f32 to vector<8x16xf32>
    %147 = arith.maximumf %145, %146 : vector<8x16xf32>
    %c0_36 = arith.constant 0 : index
    %c1 = arith.constant 1 : index
    %148 = vector.load %arg5[%c0_36, %c1] : memref<8x8xf32, #tpu.memory_space<vmem>>, vector<8x1xf32>
    %c0_37 = arith.constant 0 : index
    %c2 = arith.constant 2 : index
    %149 = vector.load %arg5[%c0_37, %c2] : memref<8x8xf32, #tpu.memory_space<vmem>>, vector<8x1xf32>
    %c0_i32_38 = arith.constant 0 : i32
    %150 = arith.cmpi eq, %arg1, %c0_i32_38 : i32
    %151 = arith.extui %150 : i1 to i32
    %c0_i32_39 = arith.constant 0 : i32
    %152 = arith.cmpi ne, %151, %c0_i32_39 : i32
    scf.if %152 {
      %221 = vector.extract_strided_slice %147 {offsets = [0, 0], sizes = [8, 1], strides = [1, 1]} : vector<8x16xf32> to vector<8x1xf32>
      %c0_60 = arith.constant 0 : index
      %c0_61 = arith.constant 0 : index
      %222 = vector.load %arg8[%c0_60, %c0_61] : memref<8x1xf32, #tpu.memory_space<vmem>>, vector<8x1xf32>
      tpu.vector_store %arg8[%c0_60, %c0_61], %221 {strides = array<i32>} : memref<8x1xf32, #tpu.memory_space<vmem>>, vector<8x1xf32>,
    } else {
    }
    %c0_40 = arith.constant 0 : index
    %c0_41 = arith.constant 0 : index
    %153 = vector.load %arg8[%c0_40, %c0_41] : memref<8x1xf32, #tpu.memory_space<vmem>>, vector<8x1xf32>
    %154 = vector.shape_cast %149 : vector<8x1xf32> to vector<8x1xf32>
    %155 = vector.broadcast %154 : vector<8x1xf32> to vector<8x16xf32>
    %156 = vector.broadcast %148 : vector<8x1xf32> to vector<8x16xf32>
    %157 = arith.mulf %156, %147 : vector<8x16xf32>
    %cst_42 = arith.constant 1.000000e+00 : f32
    %158 = vector.broadcast %cst_42 : f32 to vector<8x1xf32>
    %159 = vector.extract_strided_slice %155 {offsets = [0, 0], sizes = [8, 15], strides = [1, 1]} : vector<8x16xf32> to vector<8x15xf32>
    %160 = tpu.concatenate %158, %159 in 1 : vector<8x1xf32>, vector<8x15xf32> -> vector<8x16xf32>
    %cst_43 = arith.constant 0.000000e+00 : f32
    %161 = vector.broadcast %cst_43 : f32 to vector<8x1xf32>
    %162 = vector.extract_strided_slice %157 {offsets = [0, 0], sizes = [8, 15], strides = [1, 1]} : vector<8x16xf32> to vector<8x15xf32>
    %163 = tpu.concatenate %161, %162 in 1 : vector<8x1xf32>, vector<8x15xf32> -> vector<8x16xf32>
    %164 = arith.mulf %155, %163 : vector<8x16xf32>
    %165 = arith.addf %164, %157 : vector<8x16xf32>
    %166 = arith.mulf %155, %160 : vector<8x16xf32>
    %cst_44 = arith.constant 1.000000e+00 : f32
    %167 = vector.broadcast %cst_44 : f32 to vector<8x2xf32>
    %168 = vector.extract_strided_slice %166 {offsets = [0, 0], sizes = [8, 14], strides = [1, 1]} : vector<8x16xf32> to vector<8x14xf32>
    %169 = tpu.concatenate %167, %168 in 1 : vector<8x2xf32>, vector<8x14xf32> -> vector<8x16xf32>
    %cst_45 = arith.constant 0.000000e+00 : f32
    %170 = vector.broadcast %cst_45 : f32 to vector<8x2xf32>
    %171 = vector.extract_strided_slice %165 {offsets = [0, 0], sizes = [8, 14], strides = [1, 1]} : vector<8x16xf32> to vector<8x14xf32>
    %172 = tpu.concatenate %170, %171 in 1 : vector<8x2xf32>, vector<8x14xf32> -> vector<8x16xf32>
    %173 = arith.mulf %166, %172 : vector<8x16xf32>
    %174 = arith.addf %173, %165 : vector<8x16xf32>
    %175 = arith.mulf %166, %169 : vector<8x16xf32>
    %cst_46 = arith.constant 1.000000e+00 : f32
    %176 = vector.broadcast %cst_46 : f32 to vector<8x4xf32>
    %177 = vector.extract_strided_slice %175 {offsets = [0, 0], sizes = [8, 12], strides = [1, 1]} : vector<8x16xf32> to vector<8x12xf32>
    %178 = tpu.concatenate %176, %177 in 1 : vector<8x4xf32>, vector<8x12xf32> -> vector<8x16xf32>
    %cst_47 = arith.constant 0.000000e+00 : f32
    %179 = vector.broadcast %cst_47 : f32 to vector<8x4xf32>
    %180 = vector.extract_strided_slice %174 {offsets = [0, 0], sizes = [8, 12], strides = [1, 1]} : vector<8x16xf32> to vector<8x12xf32>
    %181 = tpu.concatenate %179, %180 in 1 : vector<8x4xf32>, vector<8x12xf32> -> vector<8x16xf32>
    %182 = arith.mulf %175, %181 : vector<8x16xf32>
    %183 = arith.addf %182, %174 : vector<8x16xf32>
    %184 = arith.mulf %175, %178 : vector<8x16xf32>
    %cst_48 = arith.constant 1.000000e+00 : f32
    %185 = vector.broadcast %cst_48 : f32 to vector<8x8xf32>
    %186 = vector.extract_strided_slice %184 {offsets = [0, 0], sizes = [8, 8], strides = [1, 1]} : vector<8x16xf32> to vector<8x8xf32>
    %187 = tpu.concatenate %185, %186 in 1 : vector<8x8xf32>, vector<8x8xf32> -> vector<8x16xf32>
    %cst_49 = arith.constant 0.000000e+00 : f32
    %188 = vector.broadcast %cst_49 : f32 to vector<8x8xf32>
    %189 = vector.extract_strided_slice %183 {offsets = [0, 0], sizes = [8, 8], strides = [1, 1]} : vector<8x16xf32> to vector<8x8xf32>
    %190 = tpu.concatenate %188, %189 in 1 : vector<8x8xf32>, vector<8x8xf32> -> vector<8x16xf32>
    %191 = arith.mulf %184, %190 : vector<8x16xf32>
    %192 = arith.addf %191, %183 : vector<8x16xf32>
    %193 = arith.mulf %184, %187 : vector<8x16xf32>
    %194 = vector.broadcast %153 : vector<8x1xf32> to vector<8x16xf32>
    %195 = arith.mulf %193, %194 : vector<8x16xf32>
    %196 = arith.addf %195, %192 : vector<8x16xf32>
    %197 = vector.extract_strided_slice %196 {offsets = [0, 15], sizes = [8, 1], strides = [1, 1]} : vector<8x16xf32> to vector<8x1xf32>
    %c0_50 = arith.constant 0 : index
    %c0_51 = arith.constant 0 : index
    %198 = vector.load %arg8[%c0_50, %c0_51] : memref<8x1xf32, #tpu.memory_space<vmem>>, vector<8x1xf32>
    tpu.vector_store %arg8[%c0_50, %c0_51], %197 {strides = array<i32>} : memref<8x1xf32, #tpu.memory_space<vmem>>, vector<8x1xf32>,
    %c0_52 = arith.constant 0 : index
    %c3 = arith.constant 3 : index
    %199 = vector.load %arg5[%c0_52, %c3] : memref<8x8xf32, #tpu.memory_space<vmem>>, vector<8x1xf32>
    %c0_53 = arith.constant 0 : index
    %c4 = arith.constant 4 : index
    %200 = vector.load %arg5[%c0_53, %c4] : memref<8x8xf32, #tpu.memory_space<vmem>>, vector<8x1xf32>
    %c0_54 = arith.constant 0 : index
    %c5 = arith.constant 5 : index
    %201 = vector.load %arg5[%c0_54, %c5] : memref<8x8xf32, #tpu.memory_space<vmem>>, vector<8x1xf32>
    %c0_55 = arith.constant 0 : index
    %c6 = arith.constant 6 : index
    %202 = vector.load %arg5[%c0_55, %c6] : memref<8x8xf32, #tpu.memory_space<vmem>>, vector<8x1xf32>
    %cst_56 = arith.constant 9.99999996E-13 : f32
    %203 = vector.broadcast %cst_56 : f32 to vector<8x16xf32>
    %204 = arith.addf %203, %196 : vector<8x16xf32>
    %205 = math.log %204 : vector<8x16xf32>
    %206 = vector.broadcast %199 : vector<8x1xf32> to vector<8x16xf32>
    %207 = arith.mulf %206, %205 : vector<8x16xf32>
    %208 = math.exp %207 : vector<8x16xf32>
    %209 = arith.divf %147, %208 : vector<8x16xf32>
    %210 = vector.broadcast %201 : vector<8x1xf32> to vector<8x16xf32>
    %211 = arith.addf %209, %210 : vector<8x16xf32>
    %212 = math.log %211 : vector<8x16xf32>
    %213 = vector.broadcast %200 : vector<8x1xf32> to vector<8x16xf32>
    %214 = arith.mulf %213, %212 : vector<8x16xf32>
    %215 = math.exp %214 : vector<8x16xf32>
    %216 = vector.broadcast %202 : vector<8x1xf32> to vector<8x16xf32>
    %217 = arith.subf %215, %216 : vector<8x16xf32>
    %c0_57 = arith.constant 0 : index
    %c0_58 = arith.constant 0 : index
    %c0_59 = arith.constant 0 : index
    %218 = vector.load %arg6[%c0_57, %c0_58, %c0_59] : memref<1x8x16xf32, #tpu.memory_space<vmem>>, vector<1x8x16xf32>
    %219 = vector.shape_cast %218 : vector<1x8x16xf32> to vector<8x16xf32>
    %220 = vector.shape_cast %217 : vector<8x16xf32> to vector<1x8x16xf32>
    tpu.vector_store %arg6[%c0_57, %c0_58, %c0_59], %220 {strides = array<i32>} : memref<1x8x16xf32, #tpu.memory_space<vmem>>, vector<1x8x16xf32>,
    return
  }
  func.func @transform_0(%arg0: i32, %arg1: i32) -> (i32, i32, i32) {
    %c0_i32 = arith.constant 0 : i32
    %c0_i32_0 = arith.constant 0 : i32
    %c0_i32_1 = arith.constant 0 : i32
    return %arg0, %c0_i32, %c0_i32_0 : i32, i32, i32
  }
  func.func @transform_1(%arg0: i32, %arg1: i32) -> (i32, i32) {
    %c0_i32 = arith.constant 0 : i32
    %c0_i32_0 = arith.constant 0 : i32
    %c0_i32_1 = arith.constant 0 : i32
    return %c0_i32, %c0_i32_0 : i32, i32
  }
  func.func @transform_2(%arg0: i32, %arg1: i32) -> (i32, i32) {
    %c0_i32 = arith.constant 0 : i32
    %c0_i32_0 = arith.constant 0 : i32
    %c0_i32_1 = arith.constant 0 : i32
    return %c0_i32, %c0_i32_0 : i32, i32
  }
  func.func @transform_3(%arg0: i32, %arg1: i32) -> (i32, i32) {
    %c0_i32 = arith.constant 0 : i32
    %c0_i32_0 = arith.constant 0 : i32
    %c0_i32_1 = arith.constant 0 : i32
    return %c0_i32, %c0_i32_0 : i32, i32
  }
  func.func @transform_4(%arg0: i32, %arg1: i32) -> (i32, i32, i32) {
    %c0_i32 = arith.constant 0 : i32
    %c0_i32_0 = arith.constant 0 : i32
    return %arg0, %c0_i32, %arg1 : i32, i32, i32
  }
}

</mosaic_0001>

<llo_original>
// kernel: tpu_custom_call.1
$region0: #{tpu_custom_call.1}
  #allocation0 [shape = 'u32[]', space=smem, size = 0x4, offset = 0x4, fixed_abs, tag = 'smem constant byte address 0x4 - core index']
  #allocation1 [shape = 'u32[144,128]{1,0:T(1,128)}', space=vmem, size = 0x12000, scoped, tag = 'internal scratch']
  #allocation2 [shape = 'f32[41,384]{1,0:T(8,128)}', space=vmem, size = 0x12000, scoped, tag = 'scratch operand']
  #allocation3 [shape = 'f32[8,1]{1,0:T(8,128)}', space=vmem, size = 0x1000, scoped, tag = 'scratch operand']
  %s0 = inlined_call_operand.hbm [shape: f32[2,1,512], index: 0, kind: input, shape index: {}]
  %s1 = inlined_call_operand.hbm [shape: f32[16,41], index: 1, kind: input, shape index: {}]
  %s2 = inlined_call_operand.hbm [shape: f32[8,41], index: 2, kind: input, shape index: {}]
  %s3 = inlined_call_operand.vmem [shape: f32[8,8], index: 3, kind: input, shape index: {}]
  %s4 = inlined_call_operand.hbm [shape: f32[2,8,16], index: 4, kind: output, shape index: {}]
  %s5 = sld [smem:[#allocation0]]
  $region65: #{tpu_custom_call.1} parent=0
    _
  %s7 = ssub.s32 1, %s5
  %s8 = scalar_select 0, %s7, %s5
  $region1: #{tpu_custom_call.1} parent=0
    #allocation4 [shape = 'u8[4096]{0}', space=vmem, size = 0x1000, scoped, tag = 'input window, operand 0']
    #allocation5 [shape = 's32[2]{0}', space=sflag, size = 0x8, scoped, tag = 'scoped memory for tpu_custom_call.1']
    #allocation6 [shape = 's32[2]{0}', space=sflag, size = 0x8, scoped, tag = 'scoped memory for tpu_custom_call.1']
    #allocation7 [shape = 'u8[8192]{0}', space=vmem, size = 0x2000, scoped, tag = 'input window, operand 1, single buffered']
    #allocation8 [shape = 's32[1]{0}', space=sflag, size = 0x4, scoped, tag = 'scoped memory for tpu_custom_call.1']
    #allocation9 [shape = 'u8[4096]{0}', space=vmem, size = 0x1000, scoped, tag = 'input window, operand 2, single buffered']
    #allocation10 [shape = 'u8[8192]{0}', space=vmem, size = 0x2000, scoped, tag = 'output window, operand 0']
    %9 = vsyncpa [#allocation5], 0
    %s10 = scalar_lea.sflag [#allocation5], 1
    %11 = vsyncpa %s10, 0
    %12 = vsyncpa [#allocation8], 0
    %13 = vsyncpa [#allocation6], 0
    %s14 = scalar_lea.sflag [#allocation6], 1
    %15 = vsyncpa %s14, 0
    loop: start=0, step=1, limit=4
    $region2: #{tpu_custom_call.1} parent=1 // loop_pre_header
      _
    $region3: #{tpu_custom_call.1} parent=1 // loop_header
      %s17 = sphi 0, %s21
      %p18 = scmp.ge.s32.totalorder %s17, 4
      %s24 = sphi 0, %s36
      %s25 = sphi 0, %s32
      %s26 = sphi 0, %s24
      %s27 = sphi 0, %s25
      %s28 = sphi 0, %s26
      %s29 = sphi 0, %s27
      %s39 = sphi 0, %s41
      %s42 = sphi 0, %s39
      %s43 = sphi 0, %s42
      %s59 = sphi 0, %s43
      %s63 = sphi 0, %s63
      %s65 = sphi 0, %s63
      %s66 = sphi 0, %s65
      %s80 = sphi 0, %s66
      %s84 = sphi 0, %s84
      %s86 = sphi 0, %s84
      %s87 = sphi 0, %s86
      %s101 = sphi 0, %s87
      %s105 = sphi 0, %s105
      %s107 = sphi 0, %s105
      %s108 = sphi 0, %s107
      %s122 = sphi 0, %s108
      %s130 = sphi 0, %s132
      %s133 = sphi 0, %s130
      %s134 = sphi 0, %s133
      %s150 = sphi 0, %s134
    $region4: #{tpu_custom_call.1} parent=1 // loop_header_branch
      %20 = sbr.rel (%p18) target = $region8
    $region5: #{tpu_custom_call.1} parent=1 // loop_body
      %s22 = ssub.s32 %s17, 1
      %s23 = ssub.s32 %s17, 2
      %s30 = sadd.s32 1, %s25
      %p31 = scmp.ge.s32.totalorder %s30, 1
      %s32 = scalar_select %p31, 0, %s30
      %s33 = sadd.s32 1, %s24
      %s34 = scalar_select %p31, %s33, %s24
      %p35 = scmp.ge.s32.totalorder %s34, 2
      %s36 = scalar_select %p35, 0, %s34
      %s37 = ssub.s32 %s24, %s36
      %p38 = scmp.eq.s32.totalorder %s37, 0
      %s40 = sadd.s32 %s39, 1
      %s41 = scalar_select %p38, %s39, %s40
      %p44 = pneg %p38
      %p45 = scmp.eq.s32.totalorder %s17, 1
      %p46 = por %p44, %p45
      %p47 = scmp.ne.s32.totalorder %s39, %s42
      %p48 = scmp.eq.s32.totalorder %s17, 0
      %p49 = por %p47, %p48
      %p50 = scmp.ne.s32.totalorder %s39, %s42
      %p51 = scmp.eq.s32.totalorder %s22, 1
      %p52 = por %p50, %p51
      %p53 = scmp.ne.s32.totalorder %s42, %s43
      %p54 = scmp.eq.s32.totalorder %s22, 0
      %p55 = por %p53, %p54
      %p56 = scmp.ne.s32.totalorder %s42, %s43
      %p57 = scmp.eq.s32.totalorder %s23, 1
      %p58 = por %p56, %p57
      %p60 = scmp.ne.s32.totalorder %s43, %s59
      %p61 = scmp.eq.s32.totalorder %s23, 0
      %p62 = por %p60, %p61
      %s64 = sadd.s32 %s63, 1
      %p67 = scmp.eq.s32.totalorder %s17, 1
      %p68 = scmp.ne.s32.totalorder %s63, %s65
      %p69 = scmp.eq.s32.totalorder %s17, 0
      %p70 = por %p68, %p69
      %p71 = scmp.ne.s32.totalorder %s63, %s65
      %p72 = scmp.eq.s32.totalorder %s22, 1
      %p73 = por %p71, %p72
      %p74 = scmp.ne.s32.totalorder %s65, %s66
      %p75 = scmp.eq.s32.totalorder %s22, 0
      %p76 = por %p74, %p75
      %p77 = scmp.ne.s32.totalorder %s65, %s66
      %p78 = scmp.eq.s32.totalorder %s23, 1
      %p79 = por %p77, %p78
      %p81 = scmp.ne.s32.totalorder %s66, %s80
      %p82 = scmp.eq.s32.totalorder %s23, 0
      %p83 = por %p81, %p82
      %s85 = sadd.s32 %s84, 1
      %p88 = scmp.eq.s32.totalorder %s17, 1
      %p89 = scmp.ne.s32.totalorder %s84, %s86
      %p90 = scmp.eq.s32.totalorder %s17, 0
      %p91 = por %p89, %p90
      %p92 = scmp.ne.s32.totalorder %s84, %s86
      %p93 = scmp.eq.s32.totalorder %s22, 1
      %p94 = por %p92, %p93
      %p95 = scmp.ne.s32.totalorder %s86, %s87
      %p96 = scmp.eq.s32.totalorder %s22, 0
      %p97 = por %p95, %p96
      %p98 = scmp.ne.s32.totalorder %s86, %s87
      %p99 = scmp.eq.s32.totalorder %s23, 1
      %p100 = por %p98, %p99
      %p102 = scmp.ne.s32.totalorder %s87, %s101
      %p103 = scmp.eq.s32.totalorder %s23, 0
      %p104 = por %p102, %p103
      %s106 = sadd.s32 %s105, 1
      %p109 = scmp.eq.s32.totalorder %s17, 1
      %p110 = scmp.ne.s32.totalorder %s105, %s107
      %p111 = scmp.eq.s32.totalorder %s17, 0
      %p112 = por %p110, %p111
      %p113 = scmp.ne.s32.totalorder %s105, %s107
      %p114 = scmp.eq.s32.totalorder %s22, 1
      %p115 = por %p113, %p114
      %p116 = scmp.ne.s32.totalorder %s107, %s108
      %p117 = scmp.eq.s32.totalorder %s22, 0
      %p118 = por %p116, %p117
      %p119 = scmp.ne.s32.totalorder %s107, %s108
      %p120 = scmp.eq.s32.totalorder %s23, 1
      %p121 = por %p119, %p120
      %p123 = scmp.ne.s32.totalorder %s108, %s122
      %p124 = scmp.eq.s32.totalorder %s23, 0
      %p125 = por %p123, %p124
      %s126 = ssub.s32 %s24, %s36
      %s127 = ssub.s32 %s25, %s32
      %s128 = sor.u32 %s126, %s127
      %p129 = scmp.eq.s32.totalorder %s128, 0
      %s131 = sadd.s32 %s130, 1
      %s132 = scalar_select %p129, %s130, %s131
      %p135 = pneg %p129
      %p136 = scmp.eq.s32.totalorder %s17, 1
      %p137 = por %p135, %p136
      %p138 = scmp.ne.s32.totalorder %s130, %s133
      %p139 = scmp.eq.s32.totalorder %s17, 0
      %p140 = por %p138, %p139
      %p141 = scmp.ne.s32.totalorder %s130, %s133
      %p142 = scmp.eq.s32.totalorder %s22, 1
      %p143 = por %p141, %p142
      %p144 = scmp.ne.s32.totalorder %s133, %s134
      %p145 = scmp.eq.s32.totalorder %s22, 0
      %p146 = por %p144, %p145
      %p147 = scmp.ne.s32.totalorder %s133, %s134
      %p148 = scmp.eq.s32.totalorder %s23, 1
      %p149 = por %p147, %p148
      %p151 = scmp.ne.s32.totalorder %s134, %s150
      %p152 = scmp.eq.s32.totalorder %s23, 0
      %p153 = por %p151, %p152
      %p154 = scmp.le.s32.totalorder 1, %s17
      %p155 = scmp.lt.s32.totalorder %s17, 3
      %p156 = pnand %p154, %p155
      %p157 = pneg %p156
      // Predicated region
      $region9: #{tpu_custom_call.1} parent=5 // pred_check
        _
      $region10: #{tpu_custom_call.1} parent=5 // pred_check_branch
        %159 = sbr.rel (%p156) target = $region12
      $region11: #{tpu_custom_call.1} parent=5 // pred_region
        %s160 = ssub.s32 %s17, 1
        // Predicated region
        $region13: #{tpu_custom_call.1} parent=11 // pred_check
          %p161 = pneg %p76
        $region14: #{tpu_custom_call.1} parent=11 // pred_check_branch
          %163 = sbr.rel (%p161) target = $region16
        $region15: #{tpu_custom_call.1} parent=11 // pred_region
          %s165 = ssub.s32 256, 256
          %166 = vsyncadd [#allocation8], %s165
          %s167 = sshll.u32 [#allocation7], 4
          %s168 = int_to_ptr.vmem [resolvable:$true] %s167
          %173 = dma.hbm_to_vmem [thread:$0]  %s1, 256, %s168, [#allocation8], 128, 128, 8
        $region16: #{tpu_custom_call.1} parent=11 // pred_fallthru
          _
        // Predicated region
        $region17: #{tpu_custom_call.1} parent=11 // pred_check
          %p174 = pneg %p97
        $region18: #{tpu_custom_call.1} parent=11 // pred_check_branch
          %176 = sbr.rel (%p174) target = $region20
        $region19: #{tpu_custom_call.1} parent=11 // pred_region
          %s178 = ssub.s32 128, 128
          %179 = vsyncadd [#allocation8], %s178
          %s181 = sshll.u32 [#allocation9], 4
          %s182 = int_to_ptr.vmem [resolvable:$true] %s181
          %184 = dma.hbm_to_vmem [thread:$0]  %s2, 128, %s182, [#allocation8]
        $region20: #{tpu_custom_call.1} parent=11 // pred_fallthru
          _
        // Predicated region
        $region21: #{tpu_custom_call.1} parent=11 // pred_check
          %p185 = pneg %p118
        $region22: #{tpu_custom_call.1} parent=11 // pred_check_branch
          %187 = sbr.rel (%p185) target = $region24
        $region23: #{tpu_custom_call.1} parent=11 // pred_region
          _
        $region24: #{tpu_custom_call.1} parent=11 // pred_fallthru
          _
      $region12: #{tpu_custom_call.1} parent=5 // pred_fallthru
        _
      %p188 = scmp.lt.s32.totalorder %s17, 2
      // Predicated region
      $region25: #{tpu_custom_call.1} parent=5 // pred_check
        %p189 = pneg %p188
      $region26: #{tpu_custom_call.1} parent=5 // pred_check_branch
        %191 = sbr.rel (%p189) target = $region28
      $region27: #{tpu_custom_call.1} parent=5 // pred_region
        // Predicated region
        $region29: #{tpu_custom_call.1} parent=27 // pred_check
          %p192 = pneg %p49
        $region30: #{tpu_custom_call.1} parent=27 // pred_check_branch
          %194 = sbr.rel (%p192) target = $region32
        $region31: #{tpu_custom_call.1} parent=27 // pred_region
          %s195 = sand.u32 %s39, 1
          %s196 = scalar_lea.sflag [#allocation5], %s195
          %s197 = sand.u32 %s39, 1
          %s198 = smul.addr %s197, 4
          %s199 = scalar_lea.vmem [#allocation4], %s198
          %s201 = ssub.s32 64, 64
          %202 = vsyncadd %s196, %s201
          %s203 = smul.addr %s24, 4
          %s204 = smul.addr %s203, 16
          %s205 = scalar_lea.hbm %s0, %s204
          %s207 = sshll.u32 %s199, 4
          %s208 = int_to_ptr.vmem [resolvable:$true] %s207
          %210 = dma.hbm_to_vmem [thread:$0]  %s205, 64, %s208, %s196
        $region32: #{tpu_custom_call.1} parent=27 // pred_fallthru
          _
      $region28: #{tpu_custom_call.1} parent=5 // pred_fallthru
        _
      %p211 = scmp.le.s32.totalorder 1, %s17
      %p212 = scmp.lt.s32.totalorder %s17, 3
      %p213 = pnand %p211, %p212
      %p214 = pneg %p213
      // Predicated region
      $region33: #{tpu_custom_call.1} parent=5 // pred_check
        _
      $region34: #{tpu_custom_call.1} parent=5 // pred_check_branch
        %216 = sbr.rel (%p213) target = $region36
      $region35: #{tpu_custom_call.1} parent=5 // pred_region
        %s217 = ssub.s32 %s17, 1
        %s218 = sand.u32 %s42, 1
        %s219 = scalar_lea.sflag [#allocation5], %s218
        %s220 = sand.u32 %s42, 1
        %s221 = smul.addr %s220, 4
        %s222 = scalar_lea.vmem [#allocation4], %s221
        // Predicated region
        $region37: #{tpu_custom_call.1} parent=35 // pred_check
          %p223 = pneg %p55
        $region38: #{tpu_custom_call.1} parent=35 // pred_check_branch
          %225 = sbr.rel (%p223) target = $region40
        $region39: #{tpu_custom_call.1} parent=35 // pred_region
          %226 = dma.done %s219, 64
        $region40: #{tpu_custom_call.1} parent=35 // pred_fallthru
          _
        // Predicated region
        $region41: #{tpu_custom_call.1} parent=35 // pred_check
          %p227 = pneg %p76
        $region42: #{tpu_custom_call.1} parent=35 // pred_check_branch
          %229 = sbr.rel (%p227) target = $region44
        $region43: #{tpu_custom_call.1} parent=35 // pred_region
          %230 = dma.done [#allocation8], 256
        $region44: #{tpu_custom_call.1} parent=35 // pred_fallthru
          _
        // Predicated region
        $region45: #{tpu_custom_call.1} parent=35 // pred_check
          %p231 = pneg %p97
        $region46: #{tpu_custom_call.1} parent=35 // pred_check_branch
          %233 = sbr.rel (%p231) target = $region48
        $region47: #{tpu_custom_call.1} parent=35 // pred_region
          %234 = dma.done [#allocation8], 128
        $region48: #{tpu_custom_call.1} parent=35 // pred_fallthru
          _
        %s235 = sand.u32 %s42, 1
        %s236 = scalar_lea.sflag [#allocation5], %s235
        %s237 = sand.u32 %s42, 1
        %s238 = smul.addr %s237, 4
        %s239 = scalar_lea.vmem [#allocation4], %s238
        %p240 = pneg %p55
        %p241 = pneg %p52
        %p242 = pneg %p76
        %p243 = pneg %p73
        %p244 = pneg %p97
        %p245 = pneg %p94
        %p246 = pneg %p118
        %p247 = pneg %p115
        %p248 = pneg %p146
        %p249 = pneg %p143
        %s250 = sand.u32 %s133, 1
        %s251 = scalar_lea.sflag [#allocation6], %s250
        %s252 = sand.u32 %s133, 1
        %s253 = smul.addr %s252, 8
        %s254 = scalar_lea.vmem [#allocation10], %s253
        %s255 = smul.u32 %s27, 256
        %s256 = sshra.s32 %s255, 7
        %s257 = sand.u32 %s255, 127
        %s258 = scalar_lea.vmem %s222, %s256 [#allocation4]
        %v259 = vld [vmem:[%s258] sm:$0xf]
        %v261 = vlaneseq
        %v262 = vshrl.u32 %v261, 7
        %v263 = vsub.s32 0, %v262
        %v264 = vrot.slane %v259, %v263
        %v265 = vlaneseq
        %v266 = vshrl.u32 %v265, 7
        %v267 = vsub.s32 1, %v266
        %v268 = vrot.slane %v259, %v267
        %v269 = vlaneseq
        %v270 = vshrl.u32 %v269, 7
        %v271 = vsub.s32 2, %v270
        %v272 = vrot.slane %v259, %v271
        %v276 = vlaneseq
        %v277 = vshrl.u32 %v276, 7
        %v278 = vsub.s32 3, %v277
        %v279 = vrot.slane %v259, %v278
        %280 = vrot.lane.b32.xlu0 %v264, 127
        %v281 = vpop.permute.xlu0 %280
        %282 = vrot.lane.b32.xlu0 %v268, 127
        %v283 = vpop.permute.xlu0 %282
        %284 = vrot.lane.b32.xlu0 %v272, 127
        %v285 = vpop.permute.xlu0 %284
        %286 = vrot.lane.b32.xlu0 %v279, 127
        %v287 = vpop.permute.xlu0 %286
        %vm288 = vcmask 1039360
        %v289 = vsel %vm288, %v281, %v283
        %v290 = vsel %vm288, %v283, %v285
        %v291 = vsel %vm288, %v285, %v287
        %295 = vrot.lane.b32.xlu0 %v264, 126
        %v296 = vpop.permute.xlu0 %295
        %297 = vrot.lane.b32.xlu0 %v268, 126
        %v298 = vpop.permute.xlu0 %297
        %299 = vrot.lane.b32.xlu0 %v272, 126
        %v300 = vpop.permute.xlu0 %299
        %301 = vrot.lane.b32.xlu0 %v279, 126
        %v302 = vpop.permute.xlu0 %301
        %vm303 = vcmask 1031168
        %v304 = vsel %vm303, %v296, %v298
        %v305 = vsel %vm303, %v298, %v300
        %v306 = vsel %vm303, %v300, %v302
        %310 = vrot.lane.b32.xlu0 %v264, 125
        %v311 = vpop.permute.xlu0 %310
        %312 = vrot.lane.b32.xlu0 %v268, 125
        %v313 = vpop.permute.xlu0 %312
        %314 = vrot.lane.b32.xlu0 %v272, 125
        %v315 = vpop.permute.xlu0 %314
        %316 = vrot.lane.b32.xlu0 %v279, 125
        %v317 = vpop.permute.xlu0 %316
        %vm318 = vcmask 1022976
        %v319 = vsel %vm318, %v311, %v313
        %v320 = vsel %vm318, %v313, %v315
        %v321 = vsel %vm318, %v315, %v317
        %325 = vrot.lane.b32.xlu0 %v264, 124
        %v326 = vpop.permute.xlu0 %325
        %327 = vrot.lane.b32.xlu0 %v268, 124
        %v328 = vpop.permute.xlu0 %327
        %329 = vrot.lane.b32.xlu0 %v272, 124
        %v330 = vpop.permute.xlu0 %329
        %331 = vrot.lane.b32.xlu0 %v279, 124
        %v332 = vpop.permute.xlu0 %331
        %vm333 = vcmask 1014784
        %v334 = vsel %vm333, %v326, %v328
        %v335 = vsel %vm333, %v328, %v330
        %v336 = vsel %vm333, %v330, %v332
        %340 = vrot.lane.b32.xlu0 %v264, 123
        %v341 = vpop.permute.xlu0 %340
        %342 = vrot.lane.b32.xlu0 %v268, 123
        %v343 = vpop.permute.xlu0 %342
        %344 = vrot.lane.b32.xlu0 %v272, 123
        %v345 = vpop.permute.xlu0 %344
        %346 = vrot.lane.b32.xlu0 %v279, 123
        %v347 = vpop.permute.xlu0 %346
        %vm348 = vcmask 1006592
        %v349 = vsel %vm348, %v341, %v343
        %v350 = vsel %vm348, %v343, %v345
        %v351 = vsel %vm348, %v345, %v347
        %355 = vrot.lane.b32.xlu0 %v264, 122
        %v356 = vpop.permute.xlu0 %355
        %357 = vrot.lane.b32.xlu0 %v268, 122
        %v358 = vpop.permute.xlu0 %357
        %359 = vrot.lane.b32.xlu0 %v272, 122
        %v360 = vpop.permute.xlu0 %359
        %361 = vrot.lane.b32.xlu0 %v279, 122
        %v362 = vpop.permute.xlu0 %361
        %vm363 = vcmask 998400
        %v364 = vsel %vm363, %v356, %v358
        %v365 = vsel %vm363, %v358, %v360
        %v366 = vsel %vm363, %v360, %v362
        %370 = vrot.lane.b32.xlu0 %v264, 121
        %v371 = vpop.permute.xlu0 %370
        %372 = vrot.lane.b32.xlu0 %v268, 121
        %v373 = vpop.permute.xlu0 %372
        %374 = vrot.lane.b32.xlu0 %v272, 121
        %v375 = vpop.permute.xlu0 %374
        %376 = vrot.lane.b32.xlu0 %v279, 121
        %v377 = vpop.permute.xlu0 %376
        %vm378 = vcmask 990208
        %v379 = vsel %vm378, %v371, %v373
        %v380 = vsel %vm378, %v373, %v375
        %v381 = vsel %vm378, %v375, %v377
        %vm385 = vcmask 1040384
        %v386 = vsel %vm385, %v264, %v289
        %v387 = vsel %vm385, %v268, %v290
        %v388 = vsel %vm385, %v272, %v291
        %vm389 = vcmask 1041408
        %v390 = vsel %vm389, %v386, %v304
        %v391 = vsel %vm389, %v387, %v305
        %v392 = vsel %vm389, %v388, %v306
        %vm393 = vcmask 1042432
        %v394 = vsel %vm393, %v390, %v319
        %v395 = vsel %vm393, %v391, %v320
        %v396 = vsel %vm393, %v392, %v321
        %vm397 = vcmask 1043456
        %v398 = vsel %vm397, %v394, %v334
        %v399 = vsel %vm397, %v395, %v335
        %v400 = vsel %vm397, %v396, %v336
        %vm401 = vcmask 1044480
        %v402 = vsel %vm401, %v398, %v349
        %v403 = vsel %vm401, %v399, %v350
        %v404 = vsel %vm401, %v400, %v351
        %vm405 = vcmask 1045504
        %v406 = vsel %vm405, %v402, %v364
        %v407 = vsel %vm405, %v403, %v365
        %v408 = vsel %vm405, %v404, %v366
        %vm409 = vcmask 1046528
        %v410 = vsel %vm409, %v406, %v379
        %v411 = vsel %vm409, %v407, %v380
        %v412 = vsel %vm409, %v408, %v381
        %413 = vst [vmem:[#allocation2] sm:$0xff] %v410
        %414 = vst [vmem:[#allocation2 + $0x8] sm:$0xff] %v411
        %415 = vst [vmem:[#allocation2 + $0x10] sm:$0xff] %v412
        %v424 = vsel %vm385, %v279, %v287
        %v425 = vsel %vm389, %v424, %v302
        %v426 = vsel %vm393, %v425, %v317
        %v427 = vsel %vm397, %v426, %v332
        %v428 = vsel %vm401, %v427, %v347
        %v429 = vsel %vm405, %v428, %v362
        %v430 = vsel %vm409, %v429, %v377
        %435 = vrot.lane.b32.xlu0 %v410, 120
        %v436 = vpop.permute.xlu0 %435
        %437 = vrot.lane.b32.xlu0 %v411, 120
        %v438 = vpop.permute.xlu0 %437
        %439 = vrot.lane.b32.xlu0 %v412, 120
        %v440 = vpop.permute.xlu0 %439
        %441 = vrot.lane.b32.xlu0 %v430, 120
        %v442 = vpop.permute.xlu0 %441
        %vm443 = vcmask 982016
        %v444 = vsel %vm443, %v436, %v438
        %v445 = vsel %vm443, %v438, %v440
        %v446 = vsel %vm443, %v440, %v442
        %450 = vst [vmem:[#allocation2 + $0x18] sm:$0xff] %v444
        %451 = vst [vmem:[#allocation2 + $0x20] sm:$0xff] %v445
        %452 = vst [vmem:[#allocation2 + $0x28] sm:$0xff] %v446
        %453 = vrot.lane.b32.xlu0 %v410, 112
        %v454 = vpop.permute.xlu0 %453
        %455 = vrot.lane.b32.xlu0 %v411, 112
        %v456 = vpop.permute.xlu0 %455
        %457 = vrot.lane.b32.xlu0 %v412, 112
        %v458 = vpop.permute.xlu0 %457
        %459 = vrot.lane.b32.xlu0 %v430, 112
        %v460 = vpop.permute.xlu0 %459
        %vm461 = vcmask 916480
        %v462 = vsel %vm461, %v454, %v456
        %v463 = vsel %vm461, %v456, %v458
        %v464 = vsel %vm461, %v458, %v460
        %468 = vst [vmem:[#allocation2 + $0x30] sm:$0xff] %v462
        %469 = vst [vmem:[#allocation2 + $0x38] sm:$0xff] %v463
        %470 = vst [vmem:[#allocation2 + $0x40] sm:$0xff] %v464
        %471 = vrot.lane.b32.xlu0 %v410, 104
        %v472 = vpop.permute.xlu0 %471
        %473 = vrot.lane.b32.xlu0 %v411, 104
        %v474 = vpop.permute.xlu0 %473
        %475 = vrot.lane.b32.xlu0 %v412, 104
        %v476 = vpop.permute.xlu0 %475
        %477 = vrot.lane.b32.xlu0 %v430, 104
        %v478 = vpop.permute.xlu0 %477
        %vm479 = vcmask 850944
        %v480 = vsel %vm479, %v472, %v474
        %v481 = vsel %vm479, %v474, %v476
        %v482 = vsel %vm479, %v476, %v478
        %486 = vst [vmem:[#allocation2 + $0x48] sm:$0xff] %v480
        %487 = vst [vmem:[#allocation2 + $0x50] sm:$0xff] %v481
        %488 = vst [vmem:[#allocation2 + $0x58] sm:$0xff] %v482
        %489 = vrot.lane.b32.xlu0 %v410, 96
        %v490 = vpop.permute.xlu0 %489
        %491 = vrot.lane.b32.xlu0 %v411, 96
        %v492 = vpop.permute.xlu0 %491
        %493 = vrot.lane.b32.xlu0 %v412, 96
        %v494 = vpop.permute.xlu0 %493
        %495 = vrot.lane.b32.xlu0 %v430, 96
        %v496 = vpop.permute.xlu0 %495
        %vm497 = vcmask 785408
        %v498 = vsel %vm497, %v490, %v492
        %v499 = vsel %vm497, %v492, %v494
        %v500 = vsel %vm497, %v494, %v496
        %504 = vst [vmem:[#allocation2 + $0x60] sm:$0xff] %v498
        %505 = vst [vmem:[#allocation2 + $0x68] sm:$0xff] %v499
        %506 = vst [vmem:[#allocation2 + $0x70] sm:$0xff] %v500
        %507 = vrot.lane.b32.xlu0 %v259, 88
        %v508 = vpop.permute.xlu0 %507
        %v509 = vrot.slane %v508, 1
        %vm510 = vcmask 719872
        %v511 = vsel %vm510, %v508, %v509
        %v513 = vlaneseq
        %vm514 = vcmp.ge.s32.totalorder %v513, 0
        %vm515 = vcmp.lt.s32.totalorder %v513, 384
        %vm516 = vmand %vm514, %vm515
        %s517 = scalar_lea.vmem [#allocation2], 120
        %518 = vst.msk [vmem:[%s517] ss:$8 sm:$0x7] %vm516, %v511
        %519 = vst.msk [vmem:[%s517] ss:$8 sm:$0x0] %vm516, %v511
        %v520 = vld [vmem:[#allocation7] sm:$0xff]
        %v521 = vld [vmem:[#allocation7 + $0x8] sm:$0xff]
        %v522 = vld [vmem:[#allocation2] sm:$0xff]
        %v523 = vld [vmem:[#allocation2 + $0x8] sm:$0xff]
        %v524 = vld [vmem:[#allocation2 + $0x10] sm:$0xff]
        %v525 = vld [vmem:[#allocation2 + $0x18] sm:$0xff]
        %v526 = vld [vmem:[#allocation2 + $0x20] sm:$0xff]
        %v527 = vld [vmem:[#allocation2 + $0x28] sm:$0xff]
        %v528 = vld [vmem:[#allocation2 + $0x30] sm:$0xff]
        %v529 = vld [vmem:[#allocation2 + $0x38] sm:$0xff]
        %v530 = vld [vmem:[#allocation2 + $0x40] sm:$0xff]
        %v531 = vld [vmem:[#allocation2 + $0x48] sm:$0xff]
        %v532 = vld [vmem:[#allocation2 + $0x50] sm:$0xff]
        %v533 = vld [vmem:[#allocation2 + $0x58] sm:$0xff]
        %v534 = vld [vmem:[#allocation2 + $0x60] sm:$0xff]
        %v535 = vld [vmem:[#allocation2 + $0x68] sm:$0xff]
        %v536 = vld [vmem:[#allocation2 + $0x70] sm:$0xff]
        %v537 = vld [vmem:[#allocation2 + $0x78] sm:$0x1]
        %v538 = vld [vmem:[#allocation2 + $0x80] sm:$0x1]
        %v539 = vld [vmem:[#allocation2 + $0x88] sm:$0x1]
        %vm540 = vcmask 334848
        %v542 = vsel %vm540, %v520, 0
        %v545 = vsel %vm540, %v521, 0
        %v548 = vsel %vm385, %v537, 0
        %v551 = vsel %vm385, %v538, 0
        %v554 = vsel %vm385, %v539, 0
        %556 = vmatprep.subr.mxu0 %v523
        %557 = vmatpush1.msra.mxu0 %v522
        %558 = vmatprep.subr.mxu0 %v526
        %559 = vmatpush1.msra.mxu0 %v525
        %560 = vmatprep.subr.mxu0 %v529
        %561 = vmatpush1.msra.mxu0 %v528
        %562 = vmatprep.subr.mxu0 %v532
        %563 = vmatpush1.msra.mxu0 %v531
        %564 = vmatprep.subr.mxu0 %v535
        %565 = vmatpush1.msra.mxu0 %v534
        %566 = vmatprep.subr.mxu0 %v551
        %567 = vmatpush1.msra.mxu0 %v548
        %568 = vmatprep.subr.mxu0 0.0
        %569 = vmatpush1.msra.mxu0 0.0
        %570 = vmatprep.subr.mxu0 0.0
        %571 = vmatpush1.msra.mxu0 0.0
        %572 = vmatprep.subr.mxu0 0.0
        %573 = vmatpush1.msra.mxu0 0.0
        %574 = vmatprep.subr.mxu0 0.0
        %575 = vmatpush1.msra.mxu0 0.0
        %576 = vmatprep.subr.mxu0 0.0
        %577 = vmatpush1.msra.mxu0 0.0
        %578 = vmatprep.subr.mxu0 0.0
        %579 = vmatpush1.msra.mxu0 0.0
        %580 = vmatprep.subr.mxu0 0.0
        %581 = vmatpush1.msra.mxu0 0.0
        %582 = vmatprep.subr.mxu0 0.0
        %583 = vmatpush1.msra.mxu0 0.0
        %584 = vmatprep.subr.mxu0 0.0
        %585 = vmatpush1.msra.mxu0 0.0
        %586 = vmatprep.subr.mxu0 0.0
        %587 = vmatpush1.msra.mxu0 0.0
        %588 = vmatprep.subr.mxu0 0.0
        %589 = vmatpush1.msra.mxu0 0.0
        %590 = vmatprep.subr.mxu0 0.0
        %591 = vmatpush1.msra.mxu0 0.0
        %592 = vmatprep.subr.mxu0 0.0
        %593 = vmatpush1.msra.mxu0 0.0
        %594 = vmatprep.subr.mxu0 0.0
        %595 = vmatpush1.msra.mxu0 0.0
        %596 = vmatprep.subr.mxu0 0.0
        %597 = vmatpush1.msra.mxu0 0.0
        %598 = vmatprep.subr.mxu0 0.0
        %599 = vmatpush1.msra.mxu0 0.0
        %600 = vmatprep.subr.mxu0 0.0
        %601 = vmatpush1.msra.mxu0 0.0
        %602 = vmatprep.subr.mxu0 0.0
        %603 = vmatpush1.msra.mxu0 0.0
        %604 = vmatprep.subr.mxu0 0.0
        %605 = vmatpush1.msra.mxu0 0.0
        %606 = vmatprep.subr.mxu0 0.0
        %607 = vmatpush1.msra.mxu0 0.0
        %608 = vmatprep.subr.mxu0 0.0
        %609 = vmatpush1.msra.mxu0 0.0
        %610 = vmatprep.subr.mxu0 0.0
        %611 = vmatpush1.msra.mxu0 0.0
        %612 = vmatprep.subr.mxu0 0.0
        %613 = vmatpush1.msra.mxu0 0.0
        %614 = vmatprep.subr.mxu0 0.0
        %615 = vmatpush1.msra.mxu0 0.0
        %616 = vmatprep.subr.mxu0 0.0
        %617 = vmatpush1.msra.mxu0 0.0
        %618 = vmatprep.subr.mxu0 0.0
        %619 = vmatpush1.msra.mxu0 0.0
        %620 = vmatprep.mubr.f32.mxu0 0.0
        %621 = vmatmul.mubr.f32.gmra.mrb[0].mxu0 %v542
        %v622 = vpop.f32.mrb[0].mxu0
        %v623 = vadd.f32 0.0, %v622
        %v624 = vpop.f32.mrb[0].mxu0
        %v625 = vadd.f32 0.0, %v624
        %626 = vmatprep.mubr.f32.mxu0 0.0
        %627 = vmatmul.mubr.f32.gmra.mrb[0].mxu0 %v545
        %v628 = vpop.f32.mrb[0].mxu0
        %v629 = vadd.f32 0.0, %v628
        %v630 = vpop.f32.mrb[0].mxu0
        %v631 = vadd.f32 0.0, %v630
        %632 = vdwg.mxu0
        %633 = vmatprep.subr.mxu0 0.0
        %634 = vmatpush1.msra.mxu0 %v524
        %635 = vmatprep.subr.mxu0 0.0
        %636 = vmatpush1.msra.mxu0 %v527
        %637 = vmatprep.subr.mxu0 0.0
        %638 = vmatpush1.msra.mxu0 %v530
        %639 = vmatprep.subr.mxu0 0.0
        %640 = vmatpush1.msra.mxu0 %v533
        %641 = vmatprep.subr.mxu0 0.0
        %642 = vmatpush1.msra.mxu0 %v536
        %643 = vmatprep.subr.mxu0 0.0
        %644 = vmatpush1.msra.mxu0 %v554
        %645 = vmatprep.subr.mxu0 0.0
        %646 = vmatpush1.msra.mxu0 0.0
        %647 = vmatprep.subr.mxu0 0.0
        %648 = vmatpush1.msra.mxu0 0.0
        %649 = vmatprep.subr.mxu0 0.0
        %650 = vmatpush1.msra.mxu0 0.0
        %651 = vmatprep.subr.mxu0 0.0
        %652 = vmatpush1.msra.mxu0 0.0
        %653 = vmatprep.subr.mxu0 0.0
        %654 = vmatpush1.msra.mxu0 0.0
        %655 = vmatprep.subr.mxu0 0.0
        %656 = vmatpush1.msra.mxu0 0.0
        %657 = vmatprep.subr.mxu0 0.0
        %658 = vmatpush1.msra.mxu0 0.0
        %659 = vmatprep.subr.mxu0 0.0
        %660 = vmatpush1.msra.mxu0 0.0
        %661 = vmatprep.subr.mxu0 0.0
        %662 = vmatpush1.msra.mxu0 0.0
        %663 = vmatprep.subr.mxu0 0.0
        %664 = vmatpush1.msra.mxu0 0.0
        %665 = vmatprep.subr.mxu0 0.0
        %666 = vmatpush1.msra.mxu0 0.0
        %667 = vmatprep.subr.mxu0 0.0
        %668 = vmatpush1.msra.mxu0 0.0
        %669 = vmatprep.subr.mxu0 0.0
        %670 = vmatpush1.msra.mxu0 0.0
        %671 = vmatprep.subr.mxu0 0.0
        %672 = vmatpush1.msra.mxu0 0.0
        %673 = vmatprep.subr.mxu0 0.0
        %674 = vmatpush1.msra.mxu0 0.0
        %675 = vmatprep.subr.mxu0 0.0
        %676 = vmatpush1.msra.mxu0 0.0
        %677 = vmatprep.subr.mxu0 0.0
        %678 = vmatpush1.msra.mxu0 0.0
        %679 = vmatprep.subr.mxu0 0.0
        %680 = vmatpush1.msra.mxu0 0.0
        %681 = vmatprep.subr.mxu0 0.0
        %682 = vmatpush1.msra.mxu0 0.0
        %683 = vmatprep.subr.mxu0 0.0
        %684 = vmatpush1.msra.mxu0 0.0
        %685 = vmatprep.subr.mxu0 0.0
        %686 = vmatpush1.msra.mxu0 0.0
        %687 = vmatprep.subr.mxu0 0.0
        %688 = vmatpush1.msra.mxu0 0.0
        %689 = vmatprep.subr.mxu0 0.0
        %690 = vmatpush1.msra.mxu0 0.0
        %691 = vmatprep.subr.mxu0 0.0
        %692 = vmatpush1.msra.mxu0 0.0
        %693 = vmatprep.subr.mxu0 0.0
        %694 = vmatpush1.msra.mxu0 0.0
        %695 = vmatprep.subr.mxu0 0.0
        %696 = vmatpush1.msra.mxu0 0.0
        %697 = vmatprep.mubr.f32.mxu0 0.0
        %698 = vmatmul.mubr.f32.gmra.mrb[0].mxu0 %v542
        %v699 = vpop.f32.mrb[0].mxu0
        %v700 = vadd.f32 0.0, %v699
        %v701 = vpop.f32.mrb[0].mxu0
        %702 = vmatprep.mubr.f32.mxu0 0.0
        %703 = vmatmul.mubr.f32.gmra.mrb[0].mxu0 %v545
        %v704 = vpop.f32.mrb[0].mxu0
        %v705 = vadd.f32 0.0, %v704
        %v706 = vpop.f32.mrb[0].mxu0
        %707 = vdwg.mxu0
        %v708 = vmul.f32 %v623, %v623
        %v709 = vmul.f32 %v625, %v625
        %v710 = vmul.f32 %v700, %v700
        %v711 = vmul.f32 %v629, %v629
        %v712 = vmul.f32 %v631, %v631
        %v713 = vmul.f32 %v705, %v705
        %v714 = vadd.f32 %v708, %v711
        %v715 = vadd.f32 %v709, %v712
        %v716 = vadd.f32 %v710, %v713
        %v717 = vlaneseq
        %v718 = vand.u32 %v717, 127
        %v719 = vadd.s32 %v718, 128
        %v720 = vadd.s32 %v718, 256
        %s721 = ssub.s32 %s255, 20
        %v722 = vstv %s721
        %v723 = vadd.s32 %v718, %v722
        %v724 = vadd.s32 %v719, %v722
        %v725 = vadd.s32 %v720, %v722
        %vm726 = vcmp.ge.s32.totalorder %v723, 0
        %vm727 = vcmp.ge.s32.totalorder %v724, 0
        %vm728 = vcmp.ge.s32.totalorder %v725, 0
        %vm729 = vcmp.lt.s32.totalorder %v723, 256
        %vm730 = vcmp.lt.s32.totalorder %v724, 256
        %vm731 = vcmp.lt.s32.totalorder %v725, 256
        %vm732 = vmand %vm726, %vm729
        %vm733 = vmand %vm727, %vm730
        %vm734 = vmand %vm728, %vm731
        %v735 = vsel %vm732, %v714, 0.0
        %v736 = vsel %vm733, %v715, 0.0
        %v737 = vsel %vm734, %v716, 0.0
        %v738 = vld [vmem:[#allocation9] sm:$0xff]
        %v739 = vld [vmem:[%s3] sm:$0xff]
        %v740 = vmul.f32 %v735, %v738
        %v741 = vsel %vm540, %v740, 0.0
        %742 = vadd.xlane.f32.xlu0 %v741
        %v743 = vpop.xlane.xlu0 %742
        %745 = vrot.lane.b32.xlu0 %v738, 16
        %v746 = vpop.permute.xlu0 %745
        %v748 = vmul.f32 %v735, %v746
        %750 = vrot.lane.b32.xlu0 %v748, 112
        %v751 = vpop.permute.xlu0 %750
        %v753 = vsel %vm540, %v751, 0.0
        %754 = vadd.xlane.f32.xlu0 %v753
        %v755 = vpop.xlane.xlu0 %754
        %756 = vrot.lane.b32.xlu0 %v738, 32
        %v757 = vpop.permute.xlu0 %756
        %v759 = vmul.f32 %v735, %v757
        %761 = vrot.lane.b32.xlu0 %v759, 96
        %v762 = vpop.permute.xlu0 %761
        %v764 = vsel %vm540, %v762, 0.0
        %765 = vadd.xlane.f32.xlu0 %v764
        %v766 = vpop.xlane.xlu0 %765
        %767 = vrot.lane.b32.xlu0 %v738, 48
        %v768 = vpop.permute.xlu0 %767
        %v770 = vmul.f32 %v735, %v768
        %772 = vrot.lane.b32.xlu0 %v770, 80
        %v773 = vpop.permute.xlu0 %772
        %v775 = vsel %vm540, %v773, 0.0
        %776 = vadd.xlane.f32.xlu0 %v775
        %v777 = vpop.xlane.xlu0 %776
        %778 = vrot.lane.b32.xlu0 %v738, 64
        %v779 = vpop.permute.xlu0 %778
        %v781 = vmul.f32 %v735, %v779
        %783 = vrot.lane.b32.xlu0 %v781, 64
        %v784 = vpop.permute.xlu0 %783
        %v786 = vsel %vm540, %v784, 0.0
        %787 = vadd.xlane.f32.xlu0 %v786
        %v788 = vpop.xlane.xlu0 %787
        %789 = vrot.lane.b32.xlu0 %v738, 80
        %v790 = vpop.permute.xlu0 %789
        %v792 = vmul.f32 %v735, %v790
        %794 = vrot.lane.b32.xlu0 %v792, 48
        %v795 = vpop.permute.xlu0 %794
        %v797 = vsel %vm540, %v795, 0.0
        %798 = vadd.xlane.f32.xlu0 %v797
        %v799 = vpop.xlane.xlu0 %798
        %800 = vrot.lane.b32.xlu0 %v738, 96
        %v801 = vpop.permute.xlu0 %800
        %v803 = vmul.f32 %v735, %v801
        %v804 = vmul.f32 %v736, %v801
        %807 = vrot.lane.b32.xlu0 %v803, 32
        %v808 = vpop.permute.xlu0 %807
        %809 = vrot.lane.b32.xlu0 %v804, 32
        %v810 = vpop.permute.xlu0 %809
        %vm811 = vcmask 261120
        %v812 = vsel %vm811, %v808, %v810
        %v814 = vsel %vm540, %v812, 0.0
        %815 = vadd.xlane.f32.xlu0 %v814
        %v816 = vpop.xlane.xlu0 %815
        %817 = vrot.lane.b32.xlu0 %v738, 112
        %v818 = vpop.permute.xlu0 %817
        %v820 = vmul.f32 %v735, %v818
        %v821 = vmul.f32 %v736, %v818
        %824 = vrot.lane.b32.xlu0 %v820, 16
        %v825 = vpop.permute.xlu0 %824
        %826 = vrot.lane.b32.xlu0 %v821, 16
        %v827 = vpop.permute.xlu0 %826
        %vm828 = vcmask 130048
        %v829 = vsel %vm828, %v825, %v827
        %v831 = vsel %vm540, %v829, 0.0
        %832 = vadd.xlane.f32.xlu0 %v831
        %v833 = vpop.xlane.xlu0 %832
        %v834 = vmul.f32 %v736, %v738
        %v835 = vsel %vm540, %v834, 0.0
        %836 = vadd.xlane.f32.xlu0 %v835
        %v837 = vpop.xlane.xlu0 %836
        %v838 = vmul.f32 %v736, %v746
        %840 = vrot.lane.b32.xlu0 %v838, 112
        %v841 = vpop.permute.xlu0 %840
        %v843 = vsel %vm540, %v841, 0.0
        %844 = vadd.xlane.f32.xlu0 %v843
        %v845 = vpop.xlane.xlu0 %844
        %v846 = vmul.f32 %v736, %v757
        %848 = vrot.lane.b32.xlu0 %v846, 96
        %v849 = vpop.permute.xlu0 %848
        %v851 = vsel %vm540, %v849, 0.0
        %852 = vadd.xlane.f32.xlu0 %v851
        %v853 = vpop.xlane.xlu0 %852
        %v854 = vmul.f32 %v736, %v768
        %856 = vrot.lane.b32.xlu0 %v854, 80
        %v857 = vpop.permute.xlu0 %856
        %v859 = vsel %vm540, %v857, 0.0
        %860 = vadd.xlane.f32.xlu0 %v859
        %v861 = vpop.xlane.xlu0 %860
        %v862 = vmul.f32 %v736, %v779
        %864 = vrot.lane.b32.xlu0 %v862, 64
        %v865 = vpop.permute.xlu0 %864
        %v867 = vsel %vm540, %v865, 0.0
        %868 = vadd.xlane.f32.xlu0 %v867
        %v869 = vpop.xlane.xlu0 %868
        %v870 = vmul.f32 %v736, %v790
        %872 = vrot.lane.b32.xlu0 %v870, 48
        %v873 = vpop.permute.xlu0 %872
        %v875 = vsel %vm540, %v873, 0.0
        %876 = vadd.xlane.f32.xlu0 %v875
        %v877 = vpop.xlane.xlu0 %876
        %v878 = vmul.f32 %v737, %v801
        %880 = vrot.lane.b32.xlu0 %v878, 32
        %v881 = vpop.permute.xlu0 %880
        %v882 = vsel %vm811, %v810, %v881
        %v884 = vsel %vm540, %v882, 0.0
        %885 = vadd.xlane.f32.xlu0 %v884
        %v886 = vpop.xlane.xlu0 %885
        %v887 = vmul.f32 %v737, %v818
        %889 = vrot.lane.b32.xlu0 %v887, 16
        %v890 = vpop.permute.xlu0 %889
        %v891 = vsel %vm828, %v827, %v890
        %v893 = vsel %vm540, %v891, 0.0
        %894 = vadd.xlane.f32.xlu0 %v893
        %v895 = vpop.xlane.xlu0 %894
        %vm896 = vcmask 7168
        %v897 = vsel %vm896, %v743, %v755
        %vm898 = vcmask 15360
        %v899 = vsel %vm898, %v897, %v766
        %vm900 = vcmask 23552
        %v901 = vsel %vm900, %v899, %v777
        %vm902 = vcmask 31744
        %v903 = vsel %vm902, %v901, %v788
        %vm904 = vcmask 39936
        %v905 = vsel %vm904, %v903, %v799
        %vm906 = vcmask 48128
        %v907 = vsel %vm906, %v905, %v816
        %vm908 = vcmask 56320
        %v909 = vsel %vm908, %v907, %v833
        %vm910 = vcmask 64512
        %v911 = vsel %vm910, %v909, %v837
        %vm912 = vcmask 72704
        %v913 = vsel %vm912, %v911, %v845
        %vm914 = vcmask 80896
        %v915 = vsel %vm914, %v913, %v853
        %vm916 = vcmask 89088
        %v917 = vsel %vm916, %v915, %v861
        %vm918 = vcmask 97280
        %v919 = vsel %vm918, %v917, %v869
        %vm920 = vcmask 105472
        %v921 = vsel %vm920, %v919, %v877
        %vm922 = vcmask 113664
        %v923 = vsel %vm922, %v921, %v886
        %vm924 = vcmask 121856
        %v925 = vsel %vm924, %v923, %v895
        %927 = vset.pattern.permute.xlu0 0
        %928 = vperm.xlu0 %927, %v739
        %v929 = vpop.permute.xlu0 %928
        %v931 = vadd.f32 %v925, %v929
        %v932 = vmax.f32 %v931, 1e-05
        %p933 = scmp.eq.s32.totalorder %s27, 0
        // Predicated region
        $region49: #{tpu_custom_call.1} parent=35 // pred_check
          %p934 = pneg %p933
        $region50: #{tpu_custom_call.1} parent=35 // pred_check_branch
          %936 = sbr.rel (%p934) target = $region52
        $region51: #{tpu_custom_call.1} parent=35 // pred_region
          %937 = vst.msk [vmem:[#allocation3] sm:$0xff] %vm896, %v932
        $region52: #{tpu_custom_call.1} parent=35 // pred_fallthru
          _
        %v938 = vld [vmem:[#allocation3] sm:$0xff]
        %939 = vset.pattern.permute.xlu0 2
        %940 = vperm.xlu0 %939, %v739
        %v941 = vpop.permute.xlu0 %940
        %943 = vset.pattern.permute.xlu0 1
        %944 = vperm.xlu0 %943, %v739
        %v945 = vpop.permute.xlu0 %944
        %v947 = vmul.f32 %v945, %v932
        %v948 = vsel %vm896, 1.0, %v941
        %950 = vrot.lane.b32.xlu0 %v947, 1
        %v951 = vpop.permute.xlu0 %950
        %v953 = vsel %vm896, 0.0, %v951
        %v954 = vmul.f32 %v941, %v953
        %v955 = vadd.f32 %v954, %v947
        %v956 = vmul.f32 %v941, %v948
        %958 = vrot.lane.b32.xlu0 %v956, 2
        %v959 = vpop.permute.xlu0 %958
        %v961 = vsel %vm898, 1.0, %v959
        %963 = vrot.lane.b32.xlu0 %v955, 2
        %v964 = vpop.permute.xlu0 %963
        %v966 = vsel %vm898, 0.0, %v964
        %v967 = vmul.f32 %v956, %v966
        %v968 = vadd.f32 %v967, %v955
        %v969 = vmul.f32 %v956, %v961
        %971 = vrot.lane.b32.xlu0 %v969, 4
        %v972 = vpop.permute.xlu0 %971
        %v974 = vsel %vm902, 1.0, %v972
        %976 = vrot.lane.b32.xlu0 %v968, 4
        %v977 = vpop.permute.xlu0 %976
        %v979 = vsel %vm902, 0.0, %v977
        %v980 = vmul.f32 %v969, %v979
        %v981 = vadd.f32 %v980, %v968
        %v982 = vmul.f32 %v969, %v974
        %984 = vrot.lane.b32.xlu0 %v982, 8
        %v985 = vpop.permute.xlu0 %984
        %v987 = vsel %vm910, 1.0, %v985
        %989 = vrot.lane.b32.xlu0 %v981, 8
        %v990 = vpop.permute.xlu0 %989
        %v992 = vsel %vm910, 0.0, %v990
        %v993 = vmul.f32 %v982, %v992
        %v994 = vadd.f32 %v993, %v981
        %v995 = vmul.f32 %v982, %v987
        %997 = vset.pattern.permute.xlu0 0
        %998 = vperm.xlu0 %997, %v938
        %v999 = vpop.permute.xlu0 %998
        %v1001 = vmul.f32 %v995, %v999
        %v1002 = vadd.f32 %v1001, %v994
        %1004 = vrot.lane.b32.xlu0 %v1002, 113
        %v1005 = vpop.permute.xlu0 %1004
        %1007 = vst.msk [vmem:[#allocation3] sm:$0xff] %vm896, %v1005
        %v1008 = vld [vmem:[%s3] sm:$0xff]
        %v1009 = vadd.f32 %v1002, 1e-12
        %v1010 = vlog2.pop %v1009
        %v1011 = vmul.f32 %v1010, 0.6931472
        %1013 = vset.pattern.permute.xlu0 3
        %1014 = vperm.xlu0 %1013, %v1008
        %v1015 = vpop.permute.xlu0 %1014
        %v1017 = vmul.f32 %v1015, %v1011
        %v1018 = vmul.f32 %v1017, 1.442695
        %v1019 = vpow.pop %v1018
        %v1020 = vrcp.pop %v1019
        %v1021 = vmul.f32 %v932, %v1020
        %1022 = vset.pattern.permute.xlu0 5
        %1023 = vperm.xlu0 %1022, %v1008
        %v1024 = vpop.permute.xlu0 %1023
        %v1026 = vadd.f32 %v1021, %v1024
        %v1027 = vlog2.pop %v1026
        %v1028 = vmul.f32 %v1027, 0.6931472
        %1029 = vset.pattern.permute.xlu0 4
        %1030 = vperm.xlu0 %1029, %v1008
        %v1031 = vpop.permute.xlu0 %1030
        %v1033 = vmul.f32 %v1031, %v1028
        %v1034 = vmul.f32 %v1033, 1.442695
        %v1035 = vpow.pop %v1034
        %1036 = vset.pattern.permute.xlu0 6
        %1037 = vperm.xlu0 %1036, %v1008
        %v1038 = vpop.permute.xlu0 %1037
        %v1040 = vsub.f32 %v1035, %v1038
        %1041 = vst.msk [vmem:[%s254] sm:$0xff] %vm828, %v1040
        %s1042 = sand.u32 %s133, 1
        %s1043 = scalar_lea.sflag [#allocation6], %s1042
        %s1044 = sand.u32 %s133, 1
        %s1045 = smul.addr %s1044, 8
        %s1046 = scalar_lea.vmem [#allocation10], %s1045
        // Predicated region
        $region53: #{tpu_custom_call.1} parent=35 // pred_check
          %p1047 = pneg %p143
        $region54: #{tpu_custom_call.1} parent=35 // pred_check_branch
          %1049 = sbr.rel (%p1047) target = $region56
        $region55: #{tpu_custom_call.1} parent=35 // pred_region
          %s1051 = ssub.s32 128, 128
          %1052 = vsyncadd %s1043, %s1051
          %s1053 = sadd.s32 %s27, %s26
          %s1054 = smul.addr %s1053, 128
          %s1055 = scalar_lea.hbm %s4, %s1054
          %s1057 = sshll.u32 %s1046, 4
          %s1058 = int_to_ptr.vmem [resolvable:$true] %s1057
          %1060 = dma.vmem_to_hbm [thread:$0]  %s1058, 128, %s1055, %s1043
        $region56: #{tpu_custom_call.1} parent=35 // pred_fallthru
          _
      $region36: #{tpu_custom_call.1} parent=5 // pred_fallthru
        _
      %p1061 = scmp.le.s32.totalorder 2, %s17
      // Predicated region
      $region57: #{tpu_custom_call.1} parent=5 // pred_check
        %p1062 = pneg %p1061
      $region58: #{tpu_custom_call.1} parent=5 // pred_check_branch
        %1064 = sbr.rel (%p1062) target = $region60
      $region59: #{tpu_custom_call.1} parent=5 // pred_region
        %s1065 = ssub.s32 %s17, 2
        // Predicated region
        $region61: #{tpu_custom_call.1} parent=59 // pred_check
          %p1066 = pneg %p149
        $region62: #{tpu_custom_call.1} parent=59 // pred_check_branch
          %1068 = sbr.rel (%p1066) target = $region64
        $region63: #{tpu_custom_call.1} parent=59 // pred_region
          %s1069 = sand.u32 %s134, 1
          %s1070 = scalar_lea.sflag [#allocation6], %s1069
          %s1071 = sand.u32 %s134, 1
          %s1072 = smul.addr %s1071, 8
          %s1073 = scalar_lea.vmem [#allocation10], %s1072
          %1074 = dma.done %s1070, 128
        $region64: #{tpu_custom_call.1} parent=59 // pred_fallthru
          _
      $region60: #{tpu_custom_call.1} parent=5 // pred_fallthru
        _
    $region6: #{tpu_custom_call.1} parent=1 // loop_footer
      %s21 = sadd.s32 1, %s17
    $region7: #{tpu_custom_call.1} parent=1 // loop_footer_branch
      %16 = sbr.rel target = $region3
    $region8: #{tpu_custom_call.1} parent=1 // loop_exit
      _
    %1075 = vsyncpa [#allocation5], 1
    %s1076 = scalar_lea.sflag [#allocation5], 1
    %1077 = vsyncpa %s1076, 1
    %1078 = vsyncpa [#allocation8], 1
    %1079 = vsyncpa [#allocation6], 1
    %s1080 = scalar_lea.sflag [#allocation6], 1
    %1081 = vsyncpa %s1080, 1

</llo_original>
